<compile_context>
chip_gen: v5e
topology: v5e:2x2
jax: 0.10.0
libtpu: 0.0.40
codegen_flags: <defaults>
</compile_context>

<pallas_src>
import functools
import math

import jax
import jax.numpy as jnp
from jax.experimental import pallas as pl
from jax.experimental.pallas import tpu as pltpu

LANES = 128           # all channel dims zero-padded to this lane width
NEG = -1e30           # finite "-inf" (avoids inf*0=NaN in the transpose-free row/col swap)

# weight-slab order
CONV1, CONV2, BOTT, DECONV1, DECONV2, FINAL = range(6)


# ---------------------------------------------------------------------------
# Fused Pallas kernel: the entire GraphUNet forward, VMEM-resident, one grid step.
# ---------------------------------------------------------------------------
def _graph_unet_kernel(a_raw_ref, x_ref, w_ref, b_ref, p_ref, out_ref, *, n0, k1, k2):
    np_ = a_raw_ref.shape[0]                 # padded node count (multiple of 8)
    f32 = jnp.float32
    row_i = jax.lax.broadcasted_iota(jnp.int32, (np_, np_), 0)
    col_i = jax.lax.broadcasted_iota(jnp.int32, (np_, np_), 1)
    ridx = jax.lax.broadcasted_iota(jnp.int32, (np_, 1), 0)
    eye = (row_i == col_i).astype(f32)

    def col_to_row(v):                       # (NP,1) -> (1,NP) via diag-mask + sublane reduce
        return jnp.sum(v * eye, axis=0, keepdims=True)

    def mm(a, b):                            # MXU matmul: bf16 operands, f32 accumulation
        return jnp.dot(a.astype(jnp.bfloat16), b.astype(jnp.bfloat16),
                       preferred_element_type=f32)

    def normalize_adj(a_raw):                # GCN norm: D^-1/2 (A_raw + I) D^-1/2  (f32)
        a_sl = a_raw + eye                   # self loop on every node (isolated -> identity row)
        dinv = jax.lax.rsqrt(jnp.sum(a_sl, axis=1, keepdims=True))
        return dinv * a_sl * col_to_row(dinv)

    def gcn(a_hat, x, idx, relu=True):       # GCNConv: A_hat @ (X @ W) + b
        h = mm(a_hat, mm(x, w_ref[idx])) + b_ref[idx]
        return jnp.maximum(h, 0.0) if relu else h

    def topk_pool(h, a_raw, p_idx, n_valid, k):
        # score = h @ (p/||p||) as VPU mul + lane-sum (p_hat precomputed at init).
        s = jnp.sum(h * p_ref[p_idx], axis=1, keepdims=True)            # (NP,1)
        gate = jnp.tanh(s)
        s = jnp.where(ridx < n_valid, s, NEG)                           # mask padded rows
        s_row = col_to_row(s)
        # beats[i,j] == 1 iff node j ranks strictly before node i (ties broken by index)
        beats = (s_row > s) | ((s_row == s) & (col_i < row_i))
        rank = jnp.sum(beats.astype(f32), axis=1, keepdims=True)        # dense rank, (NP,1)
        rank_row = col_to_row(rank)
        # P[r,i]=1 iff node i has rank r<k  (gather);  P^T built directly (no transpose op).
        p_mat = jnp.where((rank_row == row_i.astype(f32)) & (row_i < k), 1.0, 0.0)
        p_mat_t = jnp.where((rank == col_i.astype(f32)) & (col_i < k), 1.0, 0.0)
        x_pool = mm(p_mat, h * gate)                                    # x[perm]*gate[perm]
        a_pool = mm(p_mat, mm(a_raw, p_mat_t))                          # PyG filter_adj
        return x_pool, a_pool, p_mat_t

    a_raw = a_raw_ref[...]

    # ---------------- encoder ----------------
    h1 = gcn(normalize_adj(a_raw), x_ref[...], CONV1)          # conv1 + relu      (N0 nodes)
    x1, a1_raw, s1t = topk_pool(h1, a_raw, 0, n0, k1)          # pool1          -> (k1 nodes)
    h2 = gcn(normalize_adj(a1_raw), x1, CONV2)                 # conv2 + relu
    x2, a2_raw, s2t = topk_pool(h2, a1_raw, 1, k1, k2)         # pool2          -> (k2 nodes)

    # ---------------- decoder ----------------
    # All decoder layers use the twice-pooled edge set (unpool keeps edge_index unchanged);
    # one normalized adjacency serves k2-, k1- and N0-node layers.
    a2_hat = normalize_adj(a2_raw)
    x3 = gcn(a2_hat, x2, BOTT)                                 # bottleneck        (k2 nodes)
    x3 = gcn(a2_hat, mm(s2t, x3), DECONV1)                     # unpool1 + deconv1 (k1 nodes)
    x4 = gcn(a2_hat, mm(s1t, x3), DECONV2)                     # unpool2 + deconv2 (N0 nodes)
    out_ref[...] = gcn(a2_hat, x4, FINAL, relu=False)          # final conv


# ---------------------------------------------------------------------------
# pallas_call wrapper (single grid step, whole-array VMEM blocks; total data << VMEM)
# ---------------------------------------------------------------------------
def _full_spec(shape):
    zeros = (0,) * len(shape)
    return pl.BlockSpec(shape, lambda i, _z=zeros: _z)


def graph_unet_forward(params, x, edge_index, batch, pool_ratios, out_ch):
    del batch                                              # single graph; batch is all zeros
    n0, in_ch = x.shape
    np_nodes = max(8, ((n0 + 7) // 8) * 8)                 # sublane-align node dim (f32: 8)
    k1 = int(math.ceil(pool_ratios[0] * n0))               # TopKPooling keeps ceil(ratio*N)
    k2 = int(math.ceil(pool_ratios[1] * k1))

    # Dense unnormalized adjacency A[tgt, src] = edge multiplicity (self loops added in-kernel).
    # TODO(synk): the edge_index -> dense scatter-add is data-dependent and has no clean
    # Pallas form; it stays as a single XLA op feeding the fused kernel.
    a_raw = jnp.zeros((np_nodes, np_nodes), jnp.float32).at[
        edge_index[1], edge_index[0]].add(1.0)
    xp = jnp.zeros((np_nodes, LANES), jnp.float32).at[:n0, :in_ch].set(x)

    kernel = functools.partial(_graph_unet_kernel, n0=n0, k1=k1, k2=k2)
    args = (a_raw, xp, params["w"], params["b"], params["p"])
    out = pl.pallas_call(
        kernel,
        out_shape=jax.ShapeDtypeStruct((np_nodes, LANES), jnp.float32),
        grid=(1,),
        in_specs=[_full_spec(a.shape) for a in args],
        out_specs=_full_spec((np_nodes, LANES)),
        compiler_params=pltpu.CompilerParams(dimension_semantics=("arbitrary",)),
    )(*args)
    return out[:n0, :out_ch]


# ---------------------------------------------------------------------------
# Deterministic parameter init: lane-padded, slab-stacked (bf16 weights, f32 bias/gate)
# ---------------------------------------------------------------------------
def init_params(key, in_ch, hid, out_ch):
    dims = [(in_ch, hid), (hid, 2 * hid), (2 * hid, 4 * hid),
            (4 * hid, 2 * hid), (2 * hid, hid), (hid, out_ch)]
    ks = jax.random.split(key, 2 * len(dims) + 2)
    ws, bs = [], []
    for i, (ci, co) in enumerate(dims):
        w = jax.random.normal(ks[2 * i], (ci, co), jnp.float32) * (1.0 / math.sqrt(ci))
        b = 0.1 * jax.random.normal(ks[2 * i + 1], (co,), jnp.float32)
        ws.append(jnp.zeros((LANES, LANES), jnp.float32).at[:ci, :co].set(w))
        bs.append(jnp.zeros((1, LANES), jnp.float32).at[0, :co].set(b))

    def gate_vec(k, c):                                    # TopKPooling p, pre-normalized
        p = jax.random.normal(k, (c,), jnp.float32)
        p = p / jnp.sqrt(jnp.sum(p * p))
        return jnp.zeros((1, LANES), jnp.float32).at[0, :c].set(p)

    return dict(
        w=jnp.stack(ws).astype(jnp.bfloat16),              # (6,128,128) bf16 weight slab
        b=jnp.stack(bs),                                   # (6,  1,128) f32 bias slab
        p=jnp.stack([gate_vec(ks[-2], hid), gate_vec(ks[-1], 2 * hid)]),   # (2,1,128)
    )


if __name__ == "__main__":
    key = jax.random.PRNGKey(0)
    k_x, k_src, k_off, k_p = jax.random.split(key, 4)

    N, E = 16, 32                    # nodes / directed edges (no self loops)
    IN_CH, HID, OUT_CH = 4, 8, 4
    POOL_RATIOS = (0.5, 0.5)         # -> k1 = 8, k2 = 4

    x = jax.random.normal(k_x, (N, IN_CH), jnp.float32)
    src = jax.random.randint(k_src, (E,), 0, N, jnp.int32)
    off = jax.random.randint(k_off, (E,), 1, N, jnp.int32)    # ensures src != tgt
    tgt = (src + off) % N
    edge_index = jnp.stack([src, tgt]).astype(jnp.int32)       # [2, E]
    batch = jnp.zeros((N,), jnp.int32)                         # single graph

    params = init_params(k_p, IN_CH, HID, OUT_CH)

    fwd = jax.jit(graph_unet_forward, static_argnums=(4, 5))
    out = jax.block_until_ready(fwd(params, x, edge_index, batch, POOL_RATIOS, OUT_CH))
    assert out.shape == (N, OUT_CH), out.shape
    assert bool(jnp.all(jnp.isfinite(out)))
    print("KERNEL_OK")
</pallas_src>

<mosaic_0001>
module attributes {stable_mosaic.version = 11 : i64} {
  func.func @_graph_unet_kernel(%arg0: i32, %arg1: memref<16x16xf32, #tpu.memory_space<vmem>>, %arg2: memref<16x128xf32, #tpu.memory_space<vmem>>, %arg3: memref<6x128x128xbf16, #tpu.memory_space<vmem>>, %arg4: memref<6x1x128xf32, #tpu.memory_space<vmem>>, %arg5: memref<2x1x128xf32, #tpu.memory_space<vmem>>, %arg6: memref<16x128xf32, #tpu.memory_space<vmem>>) attributes {dimension_semantics = [#tpu.dimension_semantics<arbitrary>], iteration_bounds = array<i64: 1>, scalar_prefetch = 0 : i64, scratch_operands = 0 : i64, tpu.core_type = #tpu.core_type<tc>, window_params = [{pipeline_mode = #tpu.pipeline_mode<synchronous>, transform_indices = @transform_0, window_bounds = array<i64: 16, 16>}, {pipeline_mode = #tpu.pipeline_mode<synchronous>, transform_indices = @transform_1, window_bounds = array<i64: 16, 128>}, {pipeline_mode = #tpu.pipeline_mode<synchronous>, transform_indices = @transform_2, window_bounds = array<i64: 6, 128, 128>}, {pipeline_mode = #tpu.pipeline_mode<synchronous>, transform_indices = @transform_3, window_bounds = array<i64: 6, 1, 128>}, {pipeline_mode = #tpu.pipeline_mode<synchronous>, transform_indices = @transform_4, window_bounds = array<i64: 2, 1, 128>}, {pipeline_mode = #tpu.pipeline_mode<synchronous>, transform_indices = @transform_5, window_bounds = array<i64: 16, 128>}]} {
    %0 = tpu.iota {dimensions = array<i32: 0>} : vector<16x16xi32>
    %1 = tpu.iota {dimensions = array<i32: 1>} : vector<16x16xi32>
    %2 = tpu.iota {dimensions = array<i32: 0>} : vector<16x1xi32>
    %3 = arith.cmpi eq, %0, %1 : vector<16x16xi32>
    %4 = arith.extui %3 : vector<16x16xi1> to vector<16x16xi32>
    %5 = arith.sitofp %4 : vector<16x16xi32> to vector<16x16xf32>
    %c0 = arith.constant 0 : index
    %c0_0 = arith.constant 0 : index
    %6 = vector.load %arg1[%c0, %c0_0] : memref<16x16xf32, #tpu.memory_space<vmem>>, vector<16x16xf32>
    %7 = arith.addf %6, %5 : vector<16x16xf32>
    %cst = arith.constant dense<0.000000e+00> : vector<16xf32>
    %8 = vector.multi_reduction <add>, %7, %cst [1] : vector<16x16xf32> to vector<16xf32>
    %9 = vector.shape_cast %8 : vector<16xf32> to vector<16x1xf32>
    %10 = math.rsqrt %9 : vector<16x1xf32>
    %11 = vector.broadcast %10 : vector<16x1xf32> to vector<16x16xf32>
    %12 = arith.mulf %11, %7 : vector<16x16xf32>
    %13 = vector.broadcast %10 : vector<16x1xf32> to vector<16x16xf32>
    %14 = arith.mulf %13, %5 : vector<16x16xf32>
    %cst_1 = arith.constant dense<0.000000e+00> : vector<16xf32>
    %15 = vector.multi_reduction <add>, %14, %cst_1 [0] : vector<16x16xf32> to vector<16xf32>
    %16 = vector.shape_cast %15 : vector<16xf32> to vector<1x16xf32>
    %17 = vector.broadcast %16 : vector<1x16xf32> to vector<16x16xf32>
    %18 = arith.mulf %12, %17 : vector<16x16xf32>
    %c0_2 = arith.constant 0 : index
    %c0_3 = arith.constant 0 : index
    %19 = vector.load %arg2[%c0_2, %c0_3] : memref<16x128xf32, #tpu.memory_space<vmem>>, vector<16x128xf32>
    %c0_4 = arith.constant 0 : index
    %c0_5 = arith.constant 0 : index
    %c0_6 = arith.constant 0 : index
    %20 = vector.load %arg3[%c0_4, %c0_5, %c0_6] : memref<6x128x128xbf16, #tpu.memory_space<vmem>>, vector<1x128x128xbf16>
    %21 = vector.shape_cast %20 : vector<1x128x128xbf16> to vector<128x128xbf16>
    %22 = arith.truncf %19 : vector<16x128xf32> to vector<16x128xbf16>
    %cst_7 = arith.constant dense<0.000000e+00> : vector<16x128xf32>
    %23 = tpu.matmul %22, %21, %cst_7 {dimension_numbers = #tpu.dot_dimension_numbers<[1], [0], [0], [1], [0, 0, 1, 1], [], []>} : vector<16x128xbf16>, vector<128x128xbf16>, vector<16x128xf32> -> vector<16x128xf32>
    %24 = arith.truncf %18 : vector<16x16xf32> to vector<16x16xbf16>
    %25 = arith.truncf %23 : vector<16x128xf32> to vector<16x128xbf16>
    %cst_8 = arith.constant dense<0.000000e+00> : vector<16x128xf32>
    %26 = tpu.matmul %24, %25, %cst_8 {dimension_numbers = #tpu.dot_dimension_numbers<[1], [0], [0], [1], [0, 0, 1, 1], [], []>} : vector<16x16xbf16>, vector<16x128xbf16>, vector<16x128xf32> -> vector<16x128xf32>
    %c0_9 = arith.constant 0 : index
    %c0_10 = arith.constant 0 : index
    %c0_11 = arith.constant 0 : index
    %27 = vector.load %arg4[%c0_9, %c0_10, %c0_11] : memref<6x1x128xf32, #tpu.memory_space<vmem>>, vector<1x1x128xf32>
    %28 = vector.shape_cast %27 : vector<1x1x128xf32> to vector<1x128xf32>
    %29 = vector.broadcast %28 : vector<1x128xf32> to vector<16x128xf32>
    %30 = arith.addf %26, %29 : vector<16x128xf32>
    %cst_12 = arith.constant 0.000000e+00 : f32
    %31 = vector.broadcast %cst_12 : f32 to vector<16x128xf32>
    %32 = arith.maximumf %30, %31 : vector<16x128xf32>
    %c0_13 = arith.constant 0 : index
    %c0_14 = arith.constant 0 : index
    %c0_15 = arith.constant 0 : index
    %33 = vector.load %arg5[%c0_13, %c0_14, %c0_15] : memref<2x1x128xf32, #tpu.memory_space<vmem>>, vector<1x1x128xf32>
    %34 = vector.shape_cast %33 : vector<1x1x128xf32> to vector<1x128xf32>
    %35 = vector.broadcast %34 : vector<1x128xf32> to vector<16x128xf32>
    %36 = arith.mulf %32, %35 : vector<16x128xf32>
    %cst_16 = arith.constant dense<0.000000e+00> : vector<16xf32>
    %37 = vector.multi_reduction <add>, %36, %cst_16 [1] : vector<16x128xf32> to vector<16xf32>
    %38 = vector.shape_cast %37 : vector<16xf32> to vector<16x1xf32>
    %39 = math.tanh %38 : vector<16x1xf32>
    %c16_i32 = arith.constant 16 : i32
    %40 = vector.broadcast %c16_i32 : i32 to vector<16x1xi32>
    %41 = arith.cmpi slt, %2, %40 : vector<16x1xi32>
    %cst_17 = arith.constant -1.000000e+30 : f32
    %42 = vector.broadcast %cst_17 : f32 to vector<16x1xf32>
    %43 = arith.select %41, %38, %42 : vector<16x1xi1>, vector<16x1xf32>
    %44 = vector.broadcast %43 : vector<16x1xf32> to vector<16x16xf32>
    %45 = arith.mulf %44, %5 : vector<16x16xf32>
    %cst_18 = arith.constant dense<0.000000e+00> : vector<16xf32>
    %46 = vector.multi_reduction <add>, %45, %cst_18 [0] : vector<16x16xf32> to vector<16xf32>
    %47 = vector.shape_cast %46 : vector<16xf32> to vector<1x16xf32>
    %48 = vector.broadcast %47 : vector<1x16xf32> to vector<16x16xf32>
    %49 = vector.broadcast %43 : vector<16x1xf32> to vector<16x16xf32>
    %50 = arith.cmpf ogt, %48, %49 : vector<16x16xf32>
    %51 = vector.broadcast %47 : vector<1x16xf32> to vector<16x16xf32>
    %52 = vector.broadcast %43 : vector<16x1xf32> to vector<16x16xf32>
    %53 = arith.cmpf oeq, %51, %52 : vector<16x16xf32>
    %54 = arith.cmpi slt, %1, %0 : vector<16x16xi32>
    %55 = arith.andi %53, %54 : vector<16x16xi1>
    %56 = arith.ori %50, %55 : vector<16x16xi1>
    %57 = arith.extui %56 : vector<16x16xi1> to vector<16x16xi32>
    %58 = arith.sitofp %57 : vector<16x16xi32> to vector<16x16xf32>
    %cst_19 = arith.constant dense<0.000000e+00> : vector<16xf32>
    %59 = vector.multi_reduction <add>, %58, %cst_19 [1] : vector<16x16xf32> to vector<16xf32>
    %60 = vector.shape_cast %59 : vector<16xf32> to vector<16x1xf32>
    %61 = vector.broadcast %60 : vector<16x1xf32> to vector<16x16xf32>
    %62 = arith.mulf %61, %5 : vector<16x16xf32>
    %cst_20 = arith.constant dense<0.000000e+00> : vector<16xf32>
    %63 = vector.multi_reduction <add>, %62, %cst_20 [0] : vector<16x16xf32> to vector<16xf32>
    %64 = vector.shape_cast %63 : vector<16xf32> to vector<1x16xf32>
    %65 = arith.sitofp %0 : vector<16x16xi32> to vector<16x16xf32>
    %66 = vector.broadcast %64 : vector<1x16xf32> to vector<16x16xf32>
    %67 = arith.cmpf oeq, %66, %65 : vector<16x16xf32>
    %c8_i32 = arith.constant 8 : i32
    %68 = vector.broadcast %c8_i32 : i32 to vector<16x16xi32>
    %69 = arith.cmpi slt, %0, %68 : vector<16x16xi32>
    %70 = arith.andi %67, %69 : vector<16x16xi1>
    %cst_21 = arith.constant 1.000000e+00 : f32
    %cst_22 = arith.constant 0.000000e+00 : f32
    %71 = vector.broadcast %cst_21 : f32 to vector<16x16xf32>
    %72 = vector.broadcast %cst_22 : f32 to vector<16x16xf32>
    %73 = arith.select %70, %71, %72 : vector<16x16xi1>, vector<16x16xf32>
    %74 = arith.sitofp %1 : vector<16x16xi32> to vector<16x16xf32>
    %75 = vector.broadcast %60 : vector<16x1xf32> to vector<16x16xf32>
    %76 = arith.cmpf oeq, %75, %74 : vector<16x16xf32>
    %c8_i32_23 = arith.constant 8 : i32
    %77 = vector.broadcast %c8_i32_23 : i32 to vector<16x16xi32>
    %78 = arith.cmpi slt, %1, %77 : vector<16x16xi32>
    %79 = arith.andi %76, %78 : vector<16x16xi1>
    %cst_24 = arith.constant 1.000000e+00 : f32
    %cst_25 = arith.constant 0.000000e+00 : f32
    %80 = vector.broadcast %cst_24 : f32 to vector<16x16xf32>
    %81 = vector.broadcast %cst_25 : f32 to vector<16x16xf32>
    %82 = arith.select %79, %80, %81 : vector<16x16xi1>, vector<16x16xf32>
    %83 = vector.broadcast %39 : vector<16x1xf32> to vector<16x128xf32>
    %84 = arith.mulf %32, %83 : vector<16x128xf32>
    %85 = arith.truncf %73 : vector<16x16xf32> to vector<16x16xbf16>
    %86 = arith.truncf %84 : vector<16x128xf32> to vector<16x128xbf16>
    %cst_26 = arith.constant dense<0.000000e+00> : vector<16x128xf32>
    %87 = tpu.matmul %85, %86, %cst_26 {dimension_numbers = #tpu.dot_dimension_numbers<[1], [0], [0], [1], [0, 0, 1, 1], [], []>} : vector<16x16xbf16>, vector<16x128xbf16>, vector<16x128xf32> -> vector<16x128xf32>
    %88 = arith.truncf %6 : vector<16x16xf32> to vector<16x16xbf16>
    %89 = arith.truncf %82 : vector<16x16xf32> to vector<16x16xbf16>
    %cst_27 = arith.constant dense<0.000000e+00> : vector<16x16xf32>
    %90 = tpu.matmul %88, %89, %cst_27 {dimension_numbers = #tpu.dot_dimension_numbers<[1], [0], [0], [1], [0, 0, 1, 1], [], []>} : vector<16x16xbf16>, vector<16x16xbf16>, vector<16x16xf32> -> vector<16x16xf32>
    %91 = arith.truncf %73 : vector<16x16xf32> to vector<16x16xbf16>
    %92 = arith.truncf %90 : vector<16x16xf32> to vector<16x16xbf16>
    %cst_28 = arith.constant dense<0.000000e+00> : vector<16x16xf32>
    %93 = tpu.matmul %91, %92, %cst_28 {dimension_numbers = #tpu.dot_dimension_numbers<[1], [0], [0], [1], [0, 0, 1, 1], [], []>} : vector<16x16xbf16>, vector<16x16xbf16>, vector<16x16xf32> -> vector<16x16xf32>
    %94 = arith.addf %93, %5 : vector<16x16xf32>
    %cst_29 = arith.constant dense<0.000000e+00> : vector<16xf32>
    %95 = vector.multi_reduction <add>, %94, %cst_29 [1] : vector<16x16xf32> to vector<16xf32>
    %96 = vector.shape_cast %95 : vector<16xf32> to vector<16x1xf32>
    %97 = math.rsqrt %96 : vector<16x1xf32>
    %98 = vector.broadcast %97 : vector<16x1xf32> to vector<16x16xf32>
    %99 = arith.mulf %98, %94 : vector<16x16xf32>
    %100 = vector.broadcast %97 : vector<16x1xf32> to vector<16x16xf32>
    %101 = arith.mulf %100, %5 : vector<16x16xf32>
    %cst_30 = arith.constant dense<0.000000e+00> : vector<16xf32>
    %102 = vector.multi_reduction <add>, %101, %cst_30 [0] : vector<16x16xf32> to vector<16xf32>
    %103 = vector.shape_cast %102 : vector<16xf32> to vector<1x16xf32>
    %104 = vector.broadcast %103 : vector<1x16xf32> to vector<16x16xf32>
    %105 = arith.mulf %99, %104 : vector<16x16xf32>
    %c1 = arith.constant 1 : index
    %c0_31 = arith.constant 0 : index
    %c0_32 = arith.constant 0 : index
    %106 = vector.load %arg3[%c1, %c0_31, %c0_32] : memref<6x128x128xbf16, #tpu.memory_space<vmem>>, vector<1x128x128xbf16>
    %107 = vector.shape_cast %106 : vector<1x128x128xbf16> to vector<128x128xbf16>
    %108 = arith.truncf %87 : vector<16x128xf32> to vector<16x128xbf16>
    %cst_33 = arith.constant dense<0.000000e+00> : vector<16x128xf32>
    %109 = tpu.matmul %108, %107, %cst_33 {dimension_numbers = #tpu.dot_dimension_numbers<[1], [0], [0], [1], [0, 0, 1, 1], [], []>} : vector<16x128xbf16>, vector<128x128xbf16>, vector<16x128xf32> -> vector<16x128xf32>
    %110 = arith.truncf %105 : vector<16x16xf32> to vector<16x16xbf16>
    %111 = arith.truncf %109 : vector<16x128xf32> to vector<16x128xbf16>
    %cst_34 = arith.constant dense<0.000000e+00> : vector<16x128xf32>
    %112 = tpu.matmul %110, %111, %cst_34 {dimension_numbers = #tpu.dot_dimension_numbers<[1], [0], [0], [1], [0, 0, 1, 1], [], []>} : vector<16x16xbf16>, vector<16x128xbf16>, vector<16x128xf32> -> vector<16x128xf32>
    %c1_35 = arith.constant 1 : index
    %c0_36 = arith.constant 0 : index
    %c0_37 = arith.constant 0 : index
    %113 = vector.load %arg4[%c1_35, %c0_36, %c0_37] : memref<6x1x128xf32, #tpu.memory_space<vmem>>, vector<1x1x128xf32>
    %114 = vector.shape_cast %113 : vector<1x1x128xf32> to vector<1x128xf32>
    %115 = vector.broadcast %114 : vector<1x128xf32> to vector<16x128xf32>
    %116 = arith.addf %112, %115 : vector<16x128xf32>
    %cst_38 = arith.constant 0.000000e+00 : f32
    %117 = vector.broadcast %cst_38 : f32 to vector<16x128xf32>
    %118 = arith.maximumf %116, %117 : vector<16x128xf32>
    %c1_39 = arith.constant 1 : index
    %c0_40 = arith.constant 0 : index
    %c0_41 = arith.constant 0 : index
    %119 = vector.load %arg5[%c1_39, %c0_40, %c0_41] : memref<2x1x128xf32, #tpu.memory_space<vmem>>, vector<1x1x128xf32>
    %120 = vector.shape_cast %119 : vector<1x1x128xf32> to vector<1x128xf32>
    %121 = vector.broadcast %120 : vector<1x128xf32> to vector<16x128xf32>
    %122 = arith.mulf %118, %121 : vector<16x128xf32>
    %cst_42 = arith.constant dense<0.000000e+00> : vector<16xf32>
    %123 = vector.multi_reduction <add>, %122, %cst_42 [1] : vector<16x128xf32> to vector<16xf32>
    %124 = vector.shape_cast %123 : vector<16xf32> to vector<16x1xf32>
    %125 = math.tanh %124 : vector<16x1xf32>
    %c8_i32_43 = arith.constant 8 : i32
    %126 = vector.broadcast %c8_i32_43 : i32 to vector<16x1xi32>
    %127 = arith.cmpi slt, %2, %126 : vector<16x1xi32>
    %cst_44 = arith.constant -1.000000e+30 : f32
    %128 = vector.broadcast %cst_44 : f32 to vector<16x1xf32>
    %129 = arith.select %127, %124, %128 : vector<16x1xi1>, vector<16x1xf32>
    %130 = vector.broadcast %129 : vector<16x1xf32> to vector<16x16xf32>
    %131 = arith.mulf %130, %5 : vector<16x16xf32>
    %cst_45 = arith.constant dense<0.000000e+00> : vector<16xf32>
    %132 = vector.multi_reduction <add>, %131, %cst_45 [0] : vector<16x16xf32> to vector<16xf32>
    %133 = vector.shape_cast %132 : vector<16xf32> to vector<1x16xf32>
    %134 = vector.broadcast %133 : vector<1x16xf32> to vector<16x16xf32>
    %135 = vector.broadcast %129 : vector<16x1xf32> to vector<16x16xf32>
    %136 = arith.cmpf ogt, %134, %135 : vector<16x16xf32>
    %137 = vector.broadcast %133 : vector<1x16xf32> to vector<16x16xf32>
    %138 = vector.broadcast %129 : vector<16x1xf32> to vector<16x16xf32>
    %139 = arith.cmpf oeq, %137, %138 : vector<16x16xf32>
    %140 = arith.cmpi slt, %1, %0 : vector<16x16xi32>
    %141 = arith.andi %139, %140 : vector<16x16xi1>
    %142 = arith.ori %136, %141 : vector<16x16xi1>
    %143 = arith.extui %142 : vector<16x16xi1> to vector<16x16xi32>
    %144 = arith.sitofp %143 : vector<16x16xi32> to vector<16x16xf32>
    %cst_46 = arith.constant dense<0.000000e+00> : vector<16xf32>
    %145 = vector.multi_reduction <add>, %144, %cst_46 [1] : vector<16x16xf32> to vector<16xf32>
    %146 = vector.shape_cast %145 : vector<16xf32> to vector<16x1xf32>
    %147 = vector.broadcast %146 : vector<16x1xf32> to vector<16x16xf32>
    %148 = arith.mulf %147, %5 : vector<16x16xf32>
    %cst_47 = arith.constant dense<0.000000e+00> : vector<16xf32>
    %149 = vector.multi_reduction <add>, %148, %cst_47 [0] : vector<16x16xf32> to vector<16xf32>
    %150 = vector.shape_cast %149 : vector<16xf32> to vector<1x16xf32>
    %151 = arith.sitofp %0 : vector<16x16xi32> to vector<16x16xf32>
    %152 = vector.broadcast %150 : vector<1x16xf32> to vector<16x16xf32>
    %153 = arith.cmpf oeq, %152, %151 : vector<16x16xf32>
    %c4_i32 = arith.constant 4 : i32
    %154 = vector.broadcast %c4_i32 : i32 to vector<16x16xi32>
    %155 = arith.cmpi slt, %0, %154 : vector<16x16xi32>
    %156 = arith.andi %153, %155 : vector<16x16xi1>
    %cst_48 = arith.constant 1.000000e+00 : f32
    %cst_49 = arith.constant 0.000000e+00 : f32
    %157 = vector.broadcast %cst_48 : f32 to vector<16x16xf32>
    %158 = vector.broadcast %cst_49 : f32 to vector<16x16xf32>
    %159 = arith.select %156, %157, %158 : vector<16x16xi1>, vector<16x16xf32>
    %160 = arith.sitofp %1 : vector<16x16xi32> to vector<16x16xf32>
    %161 = vector.broadcast %146 : vector<16x1xf32> to vector<16x16xf32>
    %162 = arith.cmpf oeq, %161, %160 : vector<16x16xf32>
    %c4_i32_50 = arith.constant 4 : i32
    %163 = vector.broadcast %c4_i32_50 : i32 to vector<16x16xi32>
    %164 = arith.cmpi slt, %1, %163 : vector<16x16xi32>
    %165 = arith.andi %162, %164 : vector<16x16xi1>
    %cst_51 = arith.constant 1.000000e+00 : f32
    %cst_52 = arith.constant 0.000000e+00 : f32
    %166 = vector.broadcast %cst_51 : f32 to vector<16x16xf32>
    %167 = vector.broadcast %cst_52 : f32 to vector<16x16xf32>
    %168 = arith.select %165, %166, %167 : vector<16x16xi1>, vector<16x16xf32>
    %169 = vector.broadcast %125 : vector<16x1xf32> to vector<16x128xf32>
    %170 = arith.mulf %118, %169 : vector<16x128xf32>
    %171 = arith.truncf %159 : vector<16x16xf32> to vector<16x16xbf16>
    %172 = arith.truncf %170 : vector<16x128xf32> to vector<16x128xbf16>
    %cst_53 = arith.constant dense<0.000000e+00> : vector<16x128xf32>
    %173 = tpu.matmul %171, %172, %cst_53 {dimension_numbers = #tpu.dot_dimension_numbers<[1], [0], [0], [1], [0, 0, 1, 1], [], []>} : vector<16x16xbf16>, vector<16x128xbf16>, vector<16x128xf32> -> vector<16x128xf32>
    %174 = arith.truncf %93 : vector<16x16xf32> to vector<16x16xbf16>
    %175 = arith.truncf %168 : vector<16x16xf32> to vector<16x16xbf16>
    %cst_54 = arith.constant dense<0.000000e+00> : vector<16x16xf32>
    %176 = tpu.matmul %174, %175, %cst_54 {dimension_numbers = #tpu.dot_dimension_numbers<[1], [0], [0], [1], [0, 0, 1, 1], [], []>} : vector<16x16xbf16>, vector<16x16xbf16>, vector<16x16xf32> -> vector<16x16xf32>
    %177 = arith.truncf %159 : vector<16x16xf32> to vector<16x16xbf16>
    %178 = arith.truncf %176 : vector<16x16xf32> to vector<16x16xbf16>
    %cst_55 = arith.constant dense<0.000000e+00> : vector<16x16xf32>
    %179 = tpu.matmul %177, %178, %cst_55 {dimension_numbers = #tpu.dot_dimension_numbers<[1], [0], [0], [1], [0, 0, 1, 1], [], []>} : vector<16x16xbf16>, vector<16x16xbf16>, vector<16x16xf32> -> vector<16x16xf32>
    %180 = arith.addf %179, %5 : vector<16x16xf32>
    %cst_56 = arith.constant dense<0.000000e+00> : vector<16xf32>
    %181 = vector.multi_reduction <add>, %180, %cst_56 [1] : vector<16x16xf32> to vector<16xf32>
    %182 = vector.shape_cast %181 : vector<16xf32> to vector<16x1xf32>
    %183 = math.rsqrt %182 : vector<16x1xf32>
    %184 = vector.broadcast %183 : vector<16x1xf32> to vector<16x16xf32>
    %185 = arith.mulf %184, %180 : vector<16x16xf32>
    %186 = vector.broadcast %183 : vector<16x1xf32> to vector<16x16xf32>
    %187 = arith.mulf %186, %5 : vector<16x16xf32>
    %cst_57 = arith.constant dense<0.000000e+00> : vector<16xf32>
    %188 = vector.multi_reduction <add>, %187, %cst_57 [0] : vector<16x16xf32> to vector<16xf32>
    %189 = vector.shape_cast %188 : vector<16xf32> to vector<1x16xf32>
    %190 = vector.broadcast %189 : vector<1x16xf32> to vector<16x16xf32>
    %191 = arith.mulf %185, %190 : vector<16x16xf32>
    %c2 = arith.constant 2 : index
    %c0_58 = arith.constant 0 : index
    %c0_59 = arith.constant 0 : index
    %192 = vector.load %arg3[%c2, %c0_58, %c0_59] : memref<6x128x128xbf16, #tpu.memory_space<vmem>>, vector<1x128x128xbf16>
    %193 = vector.shape_cast %192 : vector<1x128x128xbf16> to vector<128x128xbf16>
    %194 = arith.truncf %173 : vector<16x128xf32> to vector<16x128xbf16>
    %cst_60 = arith.constant dense<0.000000e+00> : vector<16x128xf32>
    %195 = tpu.matmul %194, %193, %cst_60 {dimension_numbers = #tpu.dot_dimension_numbers<[1], [0], [0], [1], [0, 0, 1, 1], [], []>} : vector<16x128xbf16>, vector<128x128xbf16>, vector<16x128xf32> -> vector<16x128xf32>
    %196 = arith.truncf %191 : vector<16x16xf32> to vector<16x16xbf16>
    %197 = arith.truncf %195 : vector<16x128xf32> to vector<16x128xbf16>
    %cst_61 = arith.constant dense<0.000000e+00> : vector<16x128xf32>
    %198 = tpu.matmul %196, %197, %cst_61 {dimension_numbers = #tpu.dot_dimension_numbers<[1], [0], [0], [1], [0, 0, 1, 1], [], []>} : vector<16x16xbf16>, vector<16x128xbf16>, vector<16x128xf32> -> vector<16x128xf32>
    %c2_62 = arith.constant 2 : index
    %c0_63 = arith.constant 0 : index
    %c0_64 = arith.constant 0 : index
    %199 = vector.load %arg4[%c2_62, %c0_63, %c0_64] : memref<6x1x128xf32, #tpu.memory_space<vmem>>, vector<1x1x128xf32>
    %200 = vector.shape_cast %199 : vector<1x1x128xf32> to vector<1x128xf32>
    %201 = vector.broadcast %200 : vector<1x128xf32> to vector<16x128xf32>
    %202 = arith.addf %198, %201 : vector<16x128xf32>
    %cst_65 = arith.constant 0.000000e+00 : f32
    %203 = vector.broadcast %cst_65 : f32 to vector<16x128xf32>
    %204 = arith.maximumf %202, %203 : vector<16x128xf32>
    %205 = arith.truncf %168 : vector<16x16xf32> to vector<16x16xbf16>
    %206 = arith.truncf %204 : vector<16x128xf32> to vector<16x128xbf16>
    %cst_66 = arith.constant dense<0.000000e+00> : vector<16x128xf32>
    %207 = tpu.matmul %205, %206, %cst_66 {dimension_numbers = #tpu.dot_dimension_numbers<[1], [0], [0], [1], [0, 0, 1, 1], [], []>} : vector<16x16xbf16>, vector<16x128xbf16>, vector<16x128xf32> -> vector<16x128xf32>
    %c3 = arith.constant 3 : index
    %c0_67 = arith.constant 0 : index
    %c0_68 = arith.constant 0 : index
    %208 = vector.load %arg3[%c3, %c0_67, %c0_68] : memref<6x128x128xbf16, #tpu.memory_space<vmem>>, vector<1x128x128xbf16>
    %209 = vector.shape_cast %208 : vector<1x128x128xbf16> to vector<128x128xbf16>
    %210 = arith.truncf %207 : vector<16x128xf32> to vector<16x128xbf16>
    %cst_69 = arith.constant dense<0.000000e+00> : vector<16x128xf32>
    %211 = tpu.matmul %210, %209, %cst_69 {dimension_numbers = #tpu.dot_dimension_numbers<[1], [0], [0], [1], [0, 0, 1, 1], [], []>} : vector<16x128xbf16>, vector<128x128xbf16>, vector<16x128xf32> -> vector<16x128xf32>
    %212 = arith.truncf %191 : vector<16x16xf32> to vector<16x16xbf16>
    %213 = arith.truncf %211 : vector<16x128xf32> to vector<16x128xbf16>
    %cst_70 = arith.constant dense<0.000000e+00> : vector<16x128xf32>
    %214 = tpu.matmul %212, %213, %cst_70 {dimension_numbers = #tpu.dot_dimension_numbers<[1], [0], [0], [1], [0, 0, 1, 1], [], []>} : vector<16x16xbf16>, vector<16x128xbf16>, vector<16x128xf32> -> vector<16x128xf32>
    %c3_71 = arith.constant 3 : index
    %c0_72 = arith.constant 0 : index
    %c0_73 = arith.constant 0 : index
    %215 = vector.load %arg4[%c3_71, %c0_72, %c0_73] : memref<6x1x128xf32, #tpu.memory_space<vmem>>, vector<1x1x128xf32>
    %216 = vector.shape_cast %215 : vector<1x1x128xf32> to vector<1x128xf32>
    %217 = vector.broadcast %216 : vector<1x128xf32> to vector<16x128xf32>
    %218 = arith.addf %214, %217 : vector<16x128xf32>
    %cst_74 = arith.constant 0.000000e+00 : f32
    %219 = vector.broadcast %cst_74 : f32 to vector<16x128xf32>
    %220 = arith.maximumf %218, %219 : vector<16x128xf32>
    %221 = arith.truncf %82 : vector<16x16xf32> to vector<16x16xbf16>
    %222 = arith.truncf %220 : vector<16x128xf32> to vector<16x128xbf16>
    %cst_75 = arith.constant dense<0.000000e+00> : vector<16x128xf32>
    %223 = tpu.matmul %221, %222, %cst_75 {dimension_numbers = #tpu.dot_dimension_numbers<[1], [0], [0], [1], [0, 0, 1, 1], [], []>} : vector<16x16xbf16>, vector<16x128xbf16>, vector<16x128xf32> -> vector<16x128xf32>
    %c4 = arith.constant 4 : index
    %c0_76 = arith.constant 0 : index
    %c0_77 = arith.constant 0 : index
    %224 = vector.load %arg3[%c4, %c0_76, %c0_77] : memref<6x128x128xbf16, #tpu.memory_space<vmem>>, vector<1x128x128xbf16>
    %225 = vector.shape_cast %224 : vector<1x128x128xbf16> to vector<128x128xbf16>
    %226 = arith.truncf %223 : vector<16x128xf32> to vector<16x128xbf16>
    %cst_78 = arith.constant dense<0.000000e+00> : vector<16x128xf32>
    %227 = tpu.matmul %226, %225, %cst_78 {dimension_numbers = #tpu.dot_dimension_numbers<[1], [0], [0], [1], [0, 0, 1, 1], [], []>} : vector<16x128xbf16>, vector<128x128xbf16>, vector<16x128xf32> -> vector<16x128xf32>
    %228 = arith.truncf %191 : vector<16x16xf32> to vector<16x16xbf16>
    %229 = arith.truncf %227 : vector<16x128xf32> to vector<16x128xbf16>
    %cst_79 = arith.constant dense<0.000000e+00> : vector<16x128xf32>
    %230 = tpu.matmul %228, %229, %cst_79 {dimension_numbers = #tpu.dot_dimension_numbers<[1], [0], [0], [1], [0, 0, 1, 1], [], []>} : vector<16x16xbf16>, vector<16x128xbf16>, vector<16x128xf32> -> vector<16x128xf32>
    %c4_80 = arith.constant 4 : index
    %c0_81 = arith.constant 0 : index
    %c0_82 = arith.constant 0 : index
    %231 = vector.load %arg4[%c4_80, %c0_81, %c0_82] : memref<6x1x128xf32, #tpu.memory_space<vmem>>, vector<1x1x128xf32>
    %232 = vector.shape_cast %231 : vector<1x1x128xf32> to vector<1x128xf32>
    %233 = vector.broadcast %232 : vector<1x128xf32> to vector<16x128xf32>
    %234 = arith.addf %230, %233 : vector<16x128xf32>
    %cst_83 = arith.constant 0.000000e+00 : f32
    %235 = vector.broadcast %cst_83 : f32 to vector<16x128xf32>
    %236 = arith.maximumf %234, %235 : vector<16x128xf32>
    %c5 = arith.constant 5 : index
    %c0_84 = arith.constant 0 : index
    %c0_85 = arith.constant 0 : index
    %237 = vector.load %arg3[%c5, %c0_84, %c0_85] : memref<6x128x128xbf16, #tpu.memory_space<vmem>>, vector<1x128x128xbf16>
    %238 = vector.shape_cast %237 : vector<1x128x128xbf16> to vector<128x128xbf16>
    %239 = arith.truncf %236 : vector<16x128xf32> to vector<16x128xbf16>
    %cst_86 = arith.constant dense<0.000000e+00> : vector<16x128xf32>
    %240 = tpu.matmul %239, %238, %cst_86 {dimension_numbers = #tpu.dot_dimension_numbers<[1], [0], [0], [1], [0, 0, 1, 1], [], []>} : vector<16x128xbf16>, vector<128x128xbf16>, vector<16x128xf32> -> vector<16x128xf32>
    %241 = arith.truncf %191 : vector<16x16xf32> to vector<16x16xbf16>
    %242 = arith.truncf %240 : vector<16x128xf32> to vector<16x128xbf16>
    %cst_87 = arith.constant dense<0.000000e+00> : vector<16x128xf32>
    %243 = tpu.matmul %241, %242, %cst_87 {dimension_numbers = #tpu.dot_dimension_numbers<[1], [0], [0], [1], [0, 0, 1, 1], [], []>} : vector<16x16xbf16>, vector<16x128xbf16>, vector<16x128xf32> -> vector<16x128xf32>
    %c5_88 = arith.constant 5 : index
    %c0_89 = arith.constant 0 : index
    %c0_90 = arith.constant 0 : index
    %244 = vector.load %arg4[%c5_88, %c0_89, %c0_90] : memref<6x1x128xf32, #tpu.memory_space<vmem>>, vector<1x1x128xf32>
    %245 = vector.shape_cast %244 : vector<1x1x128xf32> to vector<1x128xf32>
    %246 = vector.broadcast %245 : vector<1x128xf32> to vector<16x128xf32>
    %247 = arith.addf %243, %246 : vector<16x128xf32>
    %c0_91 = arith.constant 0 : index
    %c0_92 = arith.constant 0 : index
    %248 = vector.load %arg6[%c0_91, %c0_92] : memref<16x128xf32, #tpu.memory_space<vmem>>, vector<16x128xf32>
    tpu.vector_store %arg6[%c0_91, %c0_92], %247 {strides = array<i32>} : memref<16x128xf32, #tpu.memory_space<vmem>>, vector<16x128xf32>,
    return
  }
  func.func @transform_0(%arg0: i32) -> (i32, i32) {
    %c0_i32 = arith.constant 0 : i32
    %c0_i32_0 = arith.constant 0 : i32
    %c0_i32_1 = arith.constant 0 : i32
    return %c0_i32, %c0_i32_0 : i32, i32
  }
  func.func @transform_1(%arg0: i32) -> (i32, i32) {
    %c0_i32 = arith.constant 0 : i32
    %c0_i32_0 = arith.constant 0 : i32
    %c0_i32_1 = arith.constant 0 : i32
    return %c0_i32, %c0_i32_0 : i32, i32
  }
  func.func @transform_2(%arg0: i32) -> (i32, i32, i32) {
    %c0_i32 = arith.constant 0 : i32
    %c0_i32_0 = arith.constant 0 : i32
    %c0_i32_1 = arith.constant 0 : i32
    %c0_i32_2 = arith.constant 0 : i32
    return %c0_i32, %c0_i32_0, %c0_i32_1 : i32, i32, i32
  }
  func.func @transform_3(%arg0: i32) -> (i32, i32, i32) {
    %c0_i32 = arith.constant 0 : i32
    %c0_i32_0 = arith.constant 0 : i32
    %c0_i32_1 = arith.constant 0 : i32
    %c0_i32_2 = arith.constant 0 : i32
    return %c0_i32, %c0_i32_0, %c0_i32_1 : i32, i32, i32
  }
  func.func @transform_4(%arg0: i32) -> (i32, i32, i32) {
    %c0_i32 = arith.constant 0 : i32
    %c0_i32_0 = arith.constant 0 : i32
    %c0_i32_1 = arith.constant 0 : i32
    %c0_i32_2 = arith.constant 0 : i32
    return %c0_i32, %c0_i32_0, %c0_i32_1 : i32, i32, i32
  }
  func.func @transform_5(%arg0: i32) -> (i32, i32) {
    %c0_i32 = arith.constant 0 : i32
    %c0_i32_0 = arith.constant 0 : i32
    %c0_i32_1 = arith.constant 0 : i32
    return %c0_i32, %c0_i32_0 : i32, i32
  }
}

</mosaic_0001>

<llo_original>
// kernel: graph_unet_forward.1
$region0: #{graph_unet_forward.1}
  #allocation0 [shape = 'u32[]', space=smem, size = 0x4, offset = 0x4, fixed_abs, tag = 'smem constant byte address 0x4 - core index']
  #allocation1 [shape = 'u32[72,128]{1,0:T(1,128)}', space=vmem, size = 0x9000, scoped, tag = 'internal scratch']
  %s0 = inlined_call_operand.vmem [shape: f32[16,16], index: 0, kind: input, shape index: {}]
  %s1 = inlined_call_operand.vmem [shape: f32[16,128], index: 1, kind: input, shape index: {}]
  %s2 = inlined_call_operand.vmem [shape: bf16[6,128,128], index: 2, kind: input, shape index: {}]
  %s3 = inlined_call_operand.vmem [shape: f32[6,1,128], index: 3, kind: input, shape index: {}]
  %s4 = inlined_call_operand.vmem [shape: f32[2,1,128], index: 4, kind: input, shape index: {}]
  %s5 = inlined_call_operand.vmem [shape: f32[16,128], index: 5, kind: output, shape index: {}]
  %s6 = sld [smem:[#allocation0]]
  $region30: #{graph_unet_forward.1} parent=0
    _
  %s8 = ssub.s32 1, %s6
  %s9 = scalar_select 0, %s8, %s6
  // Predicated region
  $region2: #{graph_unet_forward.1} parent=0 // pred_check
    _
  $region3: #{graph_unet_forward.1} parent=0 // pred_check_branch
    %11 = sbr.rel (0) target = $region5
  $region4: #{graph_unet_forward.1} parent=0 // pred_region
    _
  $region5: #{graph_unet_forward.1} parent=0 // pred_fallthru
    _
  // Predicated region
  $region6: #{graph_unet_forward.1} parent=0 // pred_check
    _
  $region7: #{graph_unet_forward.1} parent=0 // pred_check_branch
    %13 = sbr.rel (0) target = $region9
  $region8: #{graph_unet_forward.1} parent=0 // pred_region
    _
  $region9: #{graph_unet_forward.1} parent=0 // pred_fallthru
    _
  // Predicated region
  $region10: #{graph_unet_forward.1} parent=0 // pred_check
    _
  $region11: #{graph_unet_forward.1} parent=0 // pred_check_branch
    %15 = sbr.rel (0) target = $region13
  $region12: #{graph_unet_forward.1} parent=0 // pred_region
    _
  $region13: #{graph_unet_forward.1} parent=0 // pred_fallthru
    _
  // Predicated region
  $region14: #{graph_unet_forward.1} parent=0 // pred_check
    _
  $region15: #{graph_unet_forward.1} parent=0 // pred_check_branch
    %17 = sbr.rel (0) target = $region17
  $region16: #{graph_unet_forward.1} parent=0 // pred_region
    _
  $region17: #{graph_unet_forward.1} parent=0 // pred_fallthru
    _
  // Predicated region
  $region18: #{graph_unet_forward.1} parent=0 // pred_check
    _
  $region19: #{graph_unet_forward.1} parent=0 // pred_check_branch
    %19 = sbr.rel (0) target = $region21
  $region20: #{graph_unet_forward.1} parent=0 // pred_region
    _
  $region21: #{graph_unet_forward.1} parent=0 // pred_fallthru
    _
  %v21 = vlaneseq
  %v22 = vshrl.u32 %v21, 7
  %v23 = vadd.s32 %v22, 8
  %v24 = vlaneseq
  %v25 = vand.u32 %v24, 127
  %vm26 = vcmp.eq.s32.totalorder %v22, %v25
  %vm27 = vcmp.eq.s32.totalorder %v23, %v25
  %v28 = vsel %vm26, 1, 0
  %v29 = vsel %vm27, 1, 0
  %v30 = vcvt.s32.f32 %v28
  %v31 = vcvt.s32.f32 %v29
  %v32 = vld [vmem:[%s0] sm:$0xff]
  %v33 = vld [vmem:[%s0 + $0x8] sm:$0xff]
  %v34 = vadd.f32 %v32, %v30
  %v35 = vadd.f32 %v33, %v31
  %vm36 = vcmask 130048
  %v37 = vsel %vm36, %v34, 0.0
  %38 = vadd.xlane.f32.xlu0 %v37
  %v39 = vpop.xlane.xlu0 %38
  %v40 = vsel %vm36, %v35, 0.0
  %41 = vadd.xlane.f32.xlu0 %v40
  %v42 = vpop.xlane.xlu0 %41
  %v43 = vrsqrt.pop %v39
  %v44 = vmul.f32 %v43, %v39
  %v45 = vmul.f32 %v44, %v43
  %v46 = vmul.f32 0.5, %v45
  %v47 = vsub.f32 1.5, %v46
  %v48 = vmul.f32 %v43, %v47
  %vm49 = vweird.f32 %v39
  %vm50 = vweird.f32 %v43
  %vm51 = vmor %vm49, %vm50
  %v52 = vsel %vm51, %v43, %v48
  %v53 = vrsqrt.pop %v42
  %v54 = vmul.f32 %v53, %v42
  %v55 = vmul.f32 %v54, %v53
  %v56 = vmul.f32 0.5, %v55
  %v57 = vsub.f32 1.5, %v56
  %v58 = vmul.f32 %v53, %v57
  %vm59 = vweird.f32 %v42
  %vm60 = vweird.f32 %v53
  %vm61 = vmor %vm59, %vm60
  %v62 = vsel %vm61, %v53, %v58
  %v63 = vmul.f32 %v52, %v34
  %v64 = vmul.f32 %v62, %v35
  %v65 = vmul.f32 %v52, %v30
  %v66 = vmul.f32 %v62, %v31
  %v67 = vsel %vm36, %v65, 0.0
  %v68 = vsel %vm36, %v66, 0.0
  %v69 = vadd.f32 %v67, %v68
  %v70 = vrot.slane %v69, 4
  %v71 = vadd.f32 %v69, %v70
  %v72 = vrot.slane %v71, 2
  %v73 = vadd.f32 %v71, %v72
  %v74 = vrot.slane %v73, 1
  %v75 = vadd.f32 %v73, %v74
  %v76 = vmul.f32 %v63, %v75
  %v77 = vmul.f32 %v64, %v75
  %v78 = vld [vmem:[%s1] sm:$0xff]
  %v79 = vld [vmem:[%s1 + $0x8] sm:$0xff]
  %v80 = vld [vmem:[%s2] sm:$0xf]
  %v81 = vld [vmem:[%s2 + $0x4] sm:$0xf]
  %v82 = vld [vmem:[%s2 + $0x8] sm:$0xf]
  %v83 = vld [vmem:[%s2 + $0xc] sm:$0xf]
  %v84 = vld [vmem:[%s2 + $0x10] sm:$0xf]
  %v85 = vld [vmem:[%s2 + $0x14] sm:$0xf]
  %v86 = vld [vmem:[%s2 + $0x18] sm:$0xf]
  %v87 = vld [vmem:[%s2 + $0x1c] sm:$0xf]
  %v88 = vld [vmem:[%s2 + $0x20] sm:$0xf]
  %v89 = vld [vmem:[%s2 + $0x24] sm:$0xf]
  %v90 = vld [vmem:[%s2 + $0x28] sm:$0xf]
  %v91 = vld [vmem:[%s2 + $0x2c] sm:$0xf]
  %v92 = vld [vmem:[%s2 + $0x30] sm:$0xf]
  %v93 = vld [vmem:[%s2 + $0x34] sm:$0xf]
  %v94 = vld [vmem:[%s2 + $0x38] sm:$0xf]
  %v95 = vld [vmem:[%s2 + $0x3c] sm:$0xf]
  %v96 = vpack.c.bf16 %v79, %v78
  %v113 = vunpack.c.l.b16 %v80
  %v114 = vunpack.c.l.b16 %v81
  %v115 = vunpack.c.l.b16 %v82
  %v116 = vunpack.c.l.b16 %v83
  %v117 = vunpack.c.l.b16 %v84
  %v118 = vunpack.c.l.b16 %v85
  %v119 = vunpack.c.l.b16 %v86
  %v120 = vunpack.c.l.b16 %v87
  %v121 = vunpack.c.l.b16 %v88
  %v122 = vunpack.c.l.b16 %v89
  %v123 = vunpack.c.l.b16 %v90
  %v124 = vunpack.c.l.b16 %v91
  %v125 = vunpack.c.l.b16 %v92
  %v126 = vunpack.c.l.b16 %v93
  %v127 = vunpack.c.l.b16 %v94
  %v128 = vunpack.c.l.b16 %v95
  %v129 = vpack.c.b16 %v114, %v113
  %v130 = vpack.c.b16 %v116, %v115
  %v131 = vpack.c.b16 %v118, %v117
  %v132 = vpack.c.b16 %v120, %v119
  %v133 = vpack.c.b16 %v122, %v121
  %v134 = vpack.c.b16 %v124, %v123
  %v135 = vpack.c.b16 %v126, %v125
  %v136 = vpack.c.b16 %v128, %v127
  %145 = vmatpush.bf16.msra.mxu0 %v136
  %146 = vmatpush.bf16.msra.mxu0 %v135
  %147 = vmatpush.bf16.msra.mxu0 %v134
  %148 = vmatpush.bf16.msra.mxu0 %v133
  %149 = vmatpush.bf16.msra.mxu0 %v132
  %150 = vmatpush.bf16.msra.mxu0 %v131
  %151 = vmatpush.bf16.msra.mxu0 %v130
  %152 = vmatpush.bf16.msra.mxu0 %v129
  %153 = vmatmul.bf16.gmra.mxu0 %v96
  %v154 = vpop.f32.mrf.mxu0
  %v155 = vadd.f32 0.0, %v154
  %v156 = vpop.f32.mrf.mxu0
  %v157 = vadd.f32 0.0, %v156
  %158 = vdwg.mxu0
  %v159 = vpack.c.bf16 %v77, %v76
  %v160 = vpack.c.bf16 %v157, %v155
  %v161 = vld [vmem:[%s3] sm:$0x1]
  %v163 = vperm.slane %v161, 0
  %v166 = vsel %vm36, %v159, 0
  %168 = vmatpush.bf16.msra.mxu0 0
  %169 = vmatpush.bf16.msra.mxu0 0
  %170 = vmatpush.bf16.msra.mxu0 0
  %171 = vmatpush.bf16.msra.mxu0 0
  %172 = vmatpush.bf16.msra.mxu0 0
  %173 = vmatpush.bf16.msra.mxu0 0
  %174 = vmatpush.bf16.msra.mxu0 0
  %175 = vmatpush.bf16.msra.mxu0 %v160
  %176 = vmatmul.bf16.gmra.mxu0 %v166
  %v177 = vpop.f32.mrf.mxu0
  %v178 = vadd.f32 %v163, %v177
  %v179 = vpop.f32.mrf.mxu0
  %v180 = vadd.f32 %v163, %v179
  %181 = vdwg.mxu0
  %v182 = vmax.f32 %v178, 0.0
  %v183 = vmax.f32 %v180, 0.0
  %v184 = vld [vmem:[%s4] sm:$0x1]
  %v186 = vperm.slane %v184, 0
  %v188 = vmul.f32 %v182, %v186
  %v189 = vmul.f32 %v183, %v186
  %190 = vadd.xlane.f32.xlu0 %v188
  %v191 = vpop.xlane.xlu0 %190
  %192 = vadd.xlane.f32.xlu0 %v189
  %v193 = vpop.xlane.xlu0 %192
  %v194 = vtanh.pop %v191
  %v195 = vtanh.pop %v193
  %vm196 = vcmp.lt.s32.totalorder %v22, 16
  %vm197 = vcmp.lt.s32.totalorder %v23, 16
  %v198 = vsel %vm196, %v191, -1e+30
  %v199 = vsel %vm197, %v193, -1e+30
  %v200 = vmul.f32 %v198, %v30
  %v201 = vmul.f32 %v199, %v31
  %v202 = vsel %vm36, %v200, 0.0
  %v203 = vsel %vm36, %v201, 0.0
  %v204 = vadd.f32 %v202, %v203
  %v205 = vrot.slane %v204, 4
  %v206 = vadd.f32 %v204, %v205
  %v207 = vrot.slane %v206, 2
  %v208 = vadd.f32 %v206, %v207
  %v209 = vrot.slane %v208, 1
  %v210 = vadd.f32 %v208, %v209
  %vm211 = vcmp.gt.f32.partialorder %v210, %v198
  %vm212 = vcmp.gt.f32.partialorder %v210, %v199
  %vm213 = vcmp.eq.f32.partialorder %v210, %v198
  %vm214 = vcmp.eq.f32.partialorder %v210, %v199
  %vm215 = vcmp.lt.s32.totalorder %v25, %v22
  %vm216 = vcmp.lt.s32.totalorder %v25, %v23
  %vm217 = vmand %vm213, %vm215
  %vm218 = vmand %vm214, %vm216
  %vm219 = vmor %vm211, %vm217
  %vm220 = vmor %vm212, %vm218
  %v221 = vsel %vm219, 1, 0
  %v222 = vsel %vm220, 1, 0
  %v223 = vcvt.s32.f32 %v221
  %v224 = vcvt.s32.f32 %v222
  %v225 = vsel %vm36, %v223, 0.0
  %226 = vadd.xlane.f32.xlu0 %v225
  %v227 = vpop.xlane.xlu0 %226
  %v228 = vsel %vm36, %v224, 0.0
  %229 = vadd.xlane.f32.xlu0 %v228
  %v230 = vpop.xlane.xlu0 %229
  %v231 = vmul.f32 %v227, %v30
  %v232 = vmul.f32 %v230, %v31
  %v233 = vsel %vm36, %v231, 0.0
  %v234 = vsel %vm36, %v232, 0.0
  %v235 = vadd.f32 %v233, %v234
  %v236 = vrot.slane %v235, 4
  %v237 = vadd.f32 %v235, %v236
  %v238 = vrot.slane %v237, 2
  %v239 = vadd.f32 %v237, %v238
  %v240 = vrot.slane %v239, 1
  %v241 = vadd.f32 %v239, %v240
  %v242 = vcvt.s32.f32 %v22
  %v243 = vcvt.s32.f32 %v23
  %vm244 = vcmp.eq.f32.partialorder %v241, %v242
  %vm245 = vcmp.eq.f32.partialorder %v241, %v243
  %vm246 = vcmp.lt.s32.totalorder %v22, 8
  %vm247 = vcmp.lt.s32.totalorder %v23, 8
  %vm248 = vmand %vm244, %vm246
  %vm249 = vmand %vm245, %vm247
  %v250 = vsel %vm248, 1.0, 0.0
  %v251 = vsel %vm249, 1.0, 0.0
  %v252 = vcvt.s32.f32 %v25
  %vm253 = vcmp.eq.f32.partialorder %v227, %v252
  %vm254 = vcmp.eq.f32.partialorder %v230, %v252
  %vm255 = vcmp.lt.s32.totalorder %v25, 8
  %vm256 = vmand %vm253, %vm255
  %vm257 = vmand %vm254, %vm255
  %v258 = vsel %vm256, 1.0, 0.0
  %v259 = vsel %vm257, 1.0, 0.0
  %v260 = vmul.f32 %v182, %v194
  %v261 = vmul.f32 %v183, %v195
  %v262 = vpack.c.bf16 %v251, %v250
  %v263 = vpack.c.bf16 %v261, %v260
  %v265 = vsel %vm36, %v262, 0
  %267 = vmatpush.bf16.msra.mxu0 0
  %268 = vmatpush.bf16.msra.mxu0 0
  %269 = vmatpush.bf16.msra.mxu0 0
  %270 = vmatpush.bf16.msra.mxu0 0
  %271 = vmatpush.bf16.msra.mxu0 0
  %272 = vmatpush.bf16.msra.mxu0 0
  %273 = vmatpush.bf16.msra.mxu0 0
  %274 = vmatpush.bf16.msra.mxu0 %v263
  %275 = vmatmul.bf16.gmra.mxu0 %v265
  %v276 = vpop.f32.mrf.mxu0
  %v277 = vadd.f32 0.0, %v276
  %v278 = vpop.f32.mrf.mxu0
  %v279 = vadd.f32 0.0, %v278
  %280 = vdwg.mxu0
  %v281 = vpack.c.bf16 %v33, %v32
  %v282 = vpack.c.bf16 %v259, %v258
  %v284 = vsel %vm36, %v281, 0
  %286 = vmatpush.bf16.msra.mxu0 0
  %287 = vmatpush.bf16.msra.mxu0 0
  %288 = vmatpush.bf16.msra.mxu0 0
  %289 = vmatpush.bf16.msra.mxu0 0
  %290 = vmatpush.bf16.msra.mxu0 0
  %291 = vmatpush.bf16.msra.mxu0 0
  %292 = vmatpush.bf16.msra.mxu0 0
  %293 = vmatpush.bf16.msra.mxu0 %v282
  %294 = vmatmul.bf16.gmra.mxu0 %v284
  %v295 = vpop.f32.mrf.mxu0
  %v296 = vadd.f32 0.0, %v295
  %v297 = vpop.f32.mrf.mxu0
  %v298 = vadd.f32 0.0, %v297
  %299 = vdwg.mxu0
  %v300 = vpack.c.bf16 %v298, %v296
  %301 = vmatpush.bf16.msra.mxu0 0
  %302 = vmatpush.bf16.msra.mxu0 0
  %303 = vmatpush.bf16.msra.mxu0 0
  %304 = vmatpush.bf16.msra.mxu0 0
  %305 = vmatpush.bf16.msra.mxu0 0
  %306 = vmatpush.bf16.msra.mxu0 0
  %307 = vmatpush.bf16.msra.mxu0 0
  %308 = vmatpush.bf16.msra.mxu0 %v300
  %309 = vmatmul.bf16.gmra.mxu0 %v265
  %v310 = vpop.f32.mrf.mxu0
  %v311 = vadd.f32 0.0, %v310
  %v312 = vpop.f32.mrf.mxu0
  %v313 = vadd.f32 0.0, %v312
  %314 = vdwg.mxu0
  %v315 = vadd.f32 %v311, %v30
  %v316 = vadd.f32 %v313, %v31
  %v317 = vsel %vm36, %v315, 0.0
  %318 = vadd.xlane.f32.xlu0 %v317
  %v319 = vpop.xlane.xlu0 %318
  %v320 = vsel %vm36, %v316, 0.0
  %321 = vadd.xlane.f32.xlu0 %v320
  %v322 = vpop.xlane.xlu0 %321
  %v323 = vrsqrt.pop %v319
  %v324 = vmul.f32 %v323, %v319
  %v325 = vmul.f32 %v324, %v323
  %v326 = vmul.f32 0.5, %v325
  %v327 = vsub.f32 1.5, %v326
  %v328 = vmul.f32 %v323, %v327
  %vm329 = vweird.f32 %v319
  %vm330 = vweird.f32 %v323
  %vm331 = vmor %vm329, %vm330
  %v332 = vsel %vm331, %v323, %v328
  %v333 = vrsqrt.pop %v322
  %v334 = vmul.f32 %v333, %v322
  %v335 = vmul.f32 %v334, %v333
  %v336 = vmul.f32 0.5, %v335
  %v337 = vsub.f32 1.5, %v336
  %v338 = vmul.f32 %v333, %v337
  %vm339 = vweird.f32 %v322
  %vm340 = vweird.f32 %v333
  %vm341 = vmor %vm339, %vm340
  %v342 = vsel %vm341, %v333, %v338
  %v343 = vmul.f32 %v332, %v315
  %v344 = vmul.f32 %v342, %v316
  %v345 = vmul.f32 %v332, %v30
  %v346 = vmul.f32 %v342, %v31
  %v347 = vsel %vm36, %v345, 0.0
  %v348 = vsel %vm36, %v346, 0.0
  %v349 = vadd.f32 %v347, %v348
  %v350 = vrot.slane %v349, 4
  %v351 = vadd.f32 %v349, %v350
  %v352 = vrot.slane %v351, 2
  %v353 = vadd.f32 %v351, %v352
  %v354 = vrot.slane %v353, 1
  %v355 = vadd.f32 %v353, %v354
  %v356 = vmul.f32 %v343, %v355
  %v357 = vmul.f32 %v344, %v355
  %s358 = scalar_lea.vmem %s2, 64
  %v359 = vld [vmem:[%s358] sm:$0xf]
  %v360 = vld [vmem:[%s358 + $0x4] sm:$0xf]
  %v361 = vld [vmem:[%s358 + $0x8] sm:$0xf]
  %v362 = vld [vmem:[%s358 + $0xc] sm:$0xf]
  %v363 = vld [vmem:[%s358 + $0x10] sm:$0xf]
  %v364 = vld [vmem:[%s358 + $0x14] sm:$0xf]
  %v365 = vld [vmem:[%s358 + $0x18] sm:$0xf]
  %v366 = vld [vmem:[%s358 + $0x1c] sm:$0xf]
  %v367 = vld [vmem:[%s358 + $0x20] sm:$0xf]
  %v368 = vld [vmem:[%s358 + $0x24] sm:$0xf]
  %v369 = vld [vmem:[%s358 + $0x28] sm:$0xf]
  %v370 = vld [vmem:[%s358 + $0x2c] sm:$0xf]
  %v371 = vld [vmem:[%s358 + $0x30] sm:$0xf]
  %v372 = vld [vmem:[%s358 + $0x34] sm:$0xf]
  %v373 = vld [vmem:[%s358 + $0x38] sm:$0xf]
  %v374 = vld [vmem:[%s358 + $0x3c] sm:$0xf]
  %v375 = vpack.c.bf16 %v279, %v277
  %v392 = vunpack.c.l.b16 %v359
  %v393 = vunpack.c.l.b16 %v360
  %v394 = vunpack.c.l.b16 %v361
  %v395 = vunpack.c.l.b16 %v362
  %v396 = vunpack.c.l.b16 %v363
  %v397 = vunpack.c.l.b16 %v364
  %v398 = vunpack.c.l.b16 %v365
  %v399 = vunpack.c.l.b16 %v366
  %v400 = vunpack.c.l.b16 %v367
  %v401 = vunpack.c.l.b16 %v368
  %v402 = vunpack.c.l.b16 %v369
  %v403 = vunpack.c.l.b16 %v370
  %v404 = vunpack.c.l.b16 %v371
  %v405 = vunpack.c.l.b16 %v372
  %v406 = vunpack.c.l.b16 %v373
  %v407 = vunpack.c.l.b16 %v374
  %v408 = vpack.c.b16 %v393, %v392
  %v409 = vpack.c.b16 %v395, %v394
  %v410 = vpack.c.b16 %v397, %v396
  %v411 = vpack.c.b16 %v399, %v398
  %v412 = vpack.c.b16 %v401, %v400
  %v413 = vpack.c.b16 %v403, %v402
  %v414 = vpack.c.b16 %v405, %v404
  %v415 = vpack.c.b16 %v407, %v406
  %424 = vmatpush.bf16.msra.mxu0 %v415
  %425 = vmatpush.bf16.msra.mxu0 %v414
  %426 = vmatpush.bf16.msra.mxu0 %v413
  %427 = vmatpush.bf16.msra.mxu0 %v412
  %428 = vmatpush.bf16.msra.mxu0 %v411
  %429 = vmatpush.bf16.msra.mxu0 %v410
  %430 = vmatpush.bf16.msra.mxu0 %v409
  %431 = vmatpush.bf16.msra.mxu0 %v408
  %432 = vmatmul.bf16.gmra.mxu0 %v375
  %v433 = vpop.f32.mrf.mxu0
  %v434 = vadd.f32 0.0, %v433
  %v435 = vpop.f32.mrf.mxu0
  %v436 = vadd.f32 0.0, %v435
  %437 = vdwg.mxu0
  %v438 = vpack.c.bf16 %v357, %v356
  %v439 = vpack.c.bf16 %v436, %v434
  %s440 = scalar_lea.vmem %s3, 1
  %v441 = vld [vmem:[%s440] sm:$0x1]
  %v443 = vperm.slane %v441, 0
  %v446 = vsel %vm36, %v438, 0
  %448 = vmatpush.bf16.msra.mxu0 0
  %449 = vmatpush.bf16.msra.mxu0 0
  %450 = vmatpush.bf16.msra.mxu0 0
  %451 = vmatpush.bf16.msra.mxu0 0
  %452 = vmatpush.bf16.msra.mxu0 0
  %453 = vmatpush.bf16.msra.mxu0 0
  %454 = vmatpush.bf16.msra.mxu0 0
  %455 = vmatpush.bf16.msra.mxu0 %v439
  %456 = vmatmul.bf16.gmra.mxu0 %v446
  %v457 = vpop.f32.mrf.mxu0
  %v458 = vadd.f32 %v443, %v457
  %v459 = vpop.f32.mrf.mxu0
  %v460 = vadd.f32 %v443, %v459
  %461 = vdwg.mxu0
  %v462 = vmax.f32 %v458, 0.0
  %v463 = vmax.f32 %v460, 0.0
  %s464 = scalar_lea.vmem %s4, 1
  %v465 = vld [vmem:[%s464] sm:$0x1]
  %v467 = vperm.slane %v465, 0
  %v469 = vmul.f32 %v462, %v467
  %v470 = vmul.f32 %v463, %v467
  %471 = vadd.xlane.f32.xlu0 %v469
  %v472 = vpop.xlane.xlu0 %471
  %473 = vadd.xlane.f32.xlu0 %v470
  %v474 = vpop.xlane.xlu0 %473
  %v475 = vtanh.pop %v472
  %v476 = vtanh.pop %v474
  %v477 = vsel %vm246, %v472, -1e+30
  %v478 = vsel %vm247, %v474, -1e+30
  %v479 = vmul.f32 %v477, %v30
  %v480 = vmul.f32 %v478, %v31
  %v481 = vsel %vm36, %v479, 0.0
  %v482 = vsel %vm36, %v480, 0.0
  %v483 = vadd.f32 %v481, %v482
  %v484 = vrot.slane %v483, 4
  %v485 = vadd.f32 %v483, %v484
  %v486 = vrot.slane %v485, 2
  %v487 = vadd.f32 %v485, %v486
  %v488 = vrot.slane %v487, 1
  %v489 = vadd.f32 %v487, %v488
  %vm490 = vcmp.gt.f32.partialorder %v489, %v477
  %vm491 = vcmp.gt.f32.partialorder %v489, %v478
  %vm492 = vcmp.eq.f32.partialorder %v489, %v477
  %vm493 = vcmp.eq.f32.partialorder %v489, %v478
  %vm494 = vmand %vm492, %vm215
  %vm495 = vmand %vm493, %vm216
  %vm496 = vmor %vm490, %vm494
  %vm497 = vmor %vm491, %vm495
  %v498 = vsel %vm496, 1, 0
  %v499 = vsel %vm497, 1, 0
  %v500 = vcvt.s32.f32 %v498
  %v501 = vcvt.s32.f32 %v499
  %v502 = vsel %vm36, %v500, 0.0
  %503 = vadd.xlane.f32.xlu0 %v502
  %v504 = vpop.xlane.xlu0 %503
  %v505 = vsel %vm36, %v501, 0.0
  %506 = vadd.xlane.f32.xlu0 %v505
  %v507 = vpop.xlane.xlu0 %506
  %v508 = vmul.f32 %v504, %v30
  %v509 = vmul.f32 %v507, %v31
  %v510 = vsel %vm36, %v508, 0.0
  %v511 = vsel %vm36, %v509, 0.0
  %v512 = vadd.f32 %v510, %v511
  %v513 = vrot.slane %v512, 4
  %v514 = vadd.f32 %v512, %v513
  %v515 = vrot.slane %v514, 2
  %v516 = vadd.f32 %v514, %v515
  %v517 = vrot.slane %v516, 1
  %v518 = vadd.f32 %v516, %v517
  %vm519 = vcmp.eq.f32.partialorder %v518, %v242
  %vm520 = vcmp.eq.f32.partialorder %v518, %v243
  %vm521 = vcmp.lt.s32.totalorder %v22, 4
  %vm522 = vcmp.lt.s32.totalorder %v23, 4
  %vm523 = vmand %vm519, %vm521
  %vm524 = vmand %vm520, %vm522
  %v525 = vsel %vm523, 1.0, 0.0
  %v526 = vsel %vm524, 1.0, 0.0
  %vm527 = vcmp.eq.f32.partialorder %v504, %v252
  %vm528 = vcmp.eq.f32.partialorder %v507, %v252
  %vm529 = vcmp.lt.s32.totalorder %v25, 4
  %vm530 = vmand %vm527, %vm529
  %vm531 = vmand %vm528, %vm529
  %v532 = vsel %vm530, 1.0, 0.0
  %v533 = vsel %vm531, 1.0, 0.0
  %v534 = vmul.f32 %v462, %v475
  %v535 = vmul.f32 %v463, %v476
  %v536 = vpack.c.bf16 %v526, %v525
  %v537 = vpack.c.bf16 %v535, %v534
  %v539 = vsel %vm36, %v536, 0
  %541 = vmatpush.bf16.msra.mxu0 0
  %542 = vmatpush.bf16.msra.mxu0 0
  %543 = vmatpush.bf16.msra.mxu0 0
  %544 = vmatpush.bf16.msra.mxu0 0
  %545 = vmatpush.bf16.msra.mxu0 0
  %546 = vmatpush.bf16.msra.mxu0 0
  %547 = vmatpush.bf16.msra.mxu0 0
  %548 = vmatpush.bf16.msra.mxu0 %v537
  %549 = vmatmul.bf16.gmra.mxu0 %v539
  %v550 = vpop.f32.mrf.mxu0
  %v551 = vadd.f32 0.0, %v550
  %v552 = vpop.f32.mrf.mxu0
  %v553 = vadd.f32 0.0, %v552
  %554 = vdwg.mxu0
  %v555 = vpack.c.bf16 %v313, %v311
  %v556 = vpack.c.bf16 %v533, %v532
  %v558 = vsel %vm36, %v555, 0
  %560 = vmatpush.bf16.msra.mxu0 0
  %561 = vmatpush.bf16.msra.mxu0 0
  %562 = vmatpush.bf16.msra.mxu0 0
  %563 = vmatpush.bf16.msra.mxu0 0
  %564 = vmatpush.bf16.msra.mxu0 0
  %565 = vmatpush.bf16.msra.mxu0 0
  %566 = vmatpush.bf16.msra.mxu0 0
  %567 = vmatpush.bf16.msra.mxu0 %v556
  %568 = vmatmul.bf16.gmra.mxu0 %v558
  %v569 = vpop.f32.mrf.mxu0
  %v570 = vadd.f32 0.0, %v569
  %v571 = vpop.f32.mrf.mxu0
  %v572 = vadd.f32 0.0, %v571
  %573 = vdwg.mxu0
  %v574 = vpack.c.bf16 %v572, %v570
  %575 = vmatpush.bf16.msra.mxu0 0
  %576 = vmatpush.bf16.msra.mxu0 0
  %577 = vmatpush.bf16.msra.mxu0 0
  %578 = vmatpush.bf16.msra.mxu0 0
  %579 = vmatpush.bf16.msra.mxu0 0
  %580 = vmatpush.bf16.msra.mxu0 0
  %581 = vmatpush.bf16.msra.mxu0 0
  %582 = vmatpush.bf16.msra.mxu0 %v574
  %583 = vmatmul.bf16.gmra.mxu0 %v539
  %v584 = vpop.f32.mrf.mxu0
  %v585 = vadd.f32 %v30, %v584
  %v586 = vpop.f32.mrf.mxu0
  %v587 = vadd.f32 %v31, %v586
  %588 = vdwg.mxu0
  %v589 = vsel %vm36, %v585, 0.0
  %590 = vadd.xlane.f32.xlu0 %v589
  %v591 = vpop.xlane.xlu0 %590
  %v592 = vsel %vm36, %v587, 0.0
  %593 = vadd.xlane.f32.xlu0 %v592
  %v594 = vpop.xlane.xlu0 %593
  %v595 = vrsqrt.pop %v591
  %v596 = vmul.f32 %v595, %v591
  %v597 = vmul.f32 %v596, %v595
  %v598 = vmul.f32 0.5, %v597
  %v599 = vsub.f32 1.5, %v598
  %v600 = vmul.f32 %v595, %v599
  %vm601 = vweird.f32 %v591
  %vm602 = vweird.f32 %v595
  %vm603 = vmor %vm601, %vm602
  %v604 = vsel %vm603, %v595, %v600
  %v605 = vrsqrt.pop %v594
  %v606 = vmul.f32 %v605, %v594
  %v607 = vmul.f32 %v606, %v605
  %v608 = vmul.f32 0.5, %v607
  %v609 = vsub.f32 1.5, %v608
  %v610 = vmul.f32 %v605, %v609
  %vm611 = vweird.f32 %v594
  %vm612 = vweird.f32 %v605
  %vm613 = vmor %vm611, %vm612
  %v614 = vsel %vm613, %v605, %v610
  %v615 = vmul.f32 %v604, %v585
  %v616 = vmul.f32 %v614, %v587
  %v617 = vmul.f32 %v604, %v30
  %v618 = vmul.f32 %v614, %v31
  %v619 = vsel %vm36, %v617, 0.0
  %v620 = vsel %vm36, %v618, 0.0
  %v621 = vadd.f32 %v619, %v620
  %v622 = vrot.slane %v621, 4
  %v623 = vadd.f32 %v621, %v622
  %v624 = vrot.slane %v623, 2
  %v625 = vadd.f32 %v623, %v624
  %v626 = vrot.slane %v625, 1
  %v627 = vadd.f32 %v625, %v626
  %v628 = vmul.f32 %v615, %v627
  %v629 = vmul.f32 %v616, %v627
  %s630 = scalar_lea.vmem %s2, 128
  %v631 = vld [vmem:[%s630] sm:$0xf]
  %v632 = vld [vmem:[%s630 + $0x4] sm:$0xf]
  %v633 = vld [vmem:[%s630 + $0x8] sm:$0xf]
  %v634 = vld [vmem:[%s630 + $0xc] sm:$0xf]
  %v635 = vld [vmem:[%s630 + $0x10] sm:$0xf]
  %v636 = vld [vmem:[%s630 + $0x14] sm:$0xf]
  %v637 = vld [vmem:[%s630 + $0x18] sm:$0xf]
  %v638 = vld [vmem:[%s630 + $0x1c] sm:$0xf]
  %v639 = vld [vmem:[%s630 + $0x20] sm:$0xf]
  %v640 = vld [vmem:[%s630 + $0x24] sm:$0xf]
  %v641 = vld [vmem:[%s630 + $0x28] sm:$0xf]
  %v642 = vld [vmem:[%s630 + $0x2c] sm:$0xf]
  %v643 = vld [vmem:[%s630 + $0x30] sm:$0xf]
  %v644 = vld [vmem:[%s630 + $0x34] sm:$0xf]
  %v645 = vld [vmem:[%s630 + $0x38] sm:$0xf]
  %v646 = vld [vmem:[%s630 + $0x3c] sm:$0xf]
  %v647 = vpack.c.bf16 %v553, %v551
  %v664 = vunpack.c.l.b16 %v631
  %v665 = vunpack.c.l.b16 %v632
  %v666 = vunpack.c.l.b16 %v633
  %v667 = vunpack.c.l.b16 %v634
  %v668 = vunpack.c.l.b16 %v635
  %v669 = vunpack.c.l.b16 %v636
  %v670 = vunpack.c.l.b16 %v637
  %v671 = vunpack.c.l.b16 %v638
  %v672 = vunpack.c.l.b16 %v639
  %v673 = vunpack.c.l.b16 %v640
  %v674 = vunpack.c.l.b16 %v641
  %v675 = vunpack.c.l.b16 %v642
  %v676 = vunpack.c.l.b16 %v643
  %v677 = vunpack.c.l.b16 %v644
  %v678 = vunpack.c.l.b16 %v645
  %v679 = vunpack.c.l.b16 %v646
  %v680 = vpack.c.b16 %v665, %v664
  %v681 = vpack.c.b16 %v667, %v666
  %v682 = vpack.c.b16 %v669, %v668
  %v683 = vpack.c.b16 %v671, %v670
  %v684 = vpack.c.b16 %v673, %v672
  %v685 = vpack.c.b16 %v675, %v674
  %v686 = vpack.c.b16 %v677, %v676
  %v687 = vpack.c.b16 %v679, %v678
  %696 = vmatpush.bf16.msra.mxu0 %v687
  %697 = vmatpush.bf16.msra.mxu0 %v686
  %698 = vmatpush.bf16.msra.mxu0 %v685
  %699 = vmatpush.bf16.msra.mxu0 %v684
  %700 = vmatpush.bf16.msra.mxu0 %v683
  %701 = vmatpush.bf16.msra.mxu0 %v682
  %702 = vmatpush.bf16.msra.mxu0 %v681
  %703 = vmatpush.bf16.msra.mxu0 %v680
  %704 = vmatmul.bf16.gmra.mxu0 %v647
  %v705 = vpop.f32.mrf.mxu0
  %v706 = vadd.f32 0.0, %v705
  %v707 = vpop.f32.mrf.mxu0
  %v708 = vadd.f32 0.0, %v707
  %709 = vdwg.mxu0
  %v710 = vpack.c.bf16 %v629, %v628
  %v711 = vpack.c.bf16 %v708, %v706
  %s712 = scalar_lea.vmem %s3, 2
  %v713 = vld [vmem:[%s712] sm:$0x1]
  %v715 = vperm.slane %v713, 0
  %v718 = vsel %vm36, %v710, 0
  %720 = vmatpush.bf16.msra.mxu0 0
  %721 = vmatpush.bf16.msra.mxu0 0
  %722 = vmatpush.bf16.msra.mxu0 0
  %723 = vmatpush.bf16.msra.mxu0 0
  %724 = vmatpush.bf16.msra.mxu0 0
  %725 = vmatpush.bf16.msra.mxu0 0
  %726 = vmatpush.bf16.msra.mxu0 0
  %727 = vmatpush.bf16.msra.mxu0 %v711
  %728 = vmatmul.bf16.gmra.mxu0 %v718
  %v729 = vpop.f32.mrf.mxu0
  %v730 = vadd.f32 %v715, %v729
  %v731 = vpop.f32.mrf.mxu0
  %v732 = vadd.f32 %v715, %v731
  %733 = vdwg.mxu0
  %v734 = vmax.f32 %v730, 0.0
  %v735 = vmax.f32 %v732, 0.0
  %v736 = vpack.c.bf16 %v735, %v734
  %v738 = vsel %vm36, %v556, 0
  %740 = vmatpush.bf16.msra.mxu0 0
  %741 = vmatpush.bf16.msra.mxu0 0
  %742 = vmatpush.bf16.msra.mxu0 0
  %743 = vmatpush.bf16.msra.mxu0 0
  %744 = vmatpush.bf16.msra.mxu0 0
  %745 = vmatpush.bf16.msra.mxu0 0
  %746 = vmatpush.bf16.msra.mxu0 0
  %747 = vmatpush.bf16.msra.mxu0 %v736
  %748 = vmatmul.bf16.gmra.mxu0 %v738
  %v749 = vpop.f32.mrf.mxu0
  %v750 = vadd.f32 0.0, %v749
  %v751 = vpop.f32.mrf.mxu0
  %v752 = vadd.f32 0.0, %v751
  %753 = vdwg.mxu0
  %s754 = scalar_lea.vmem %s2, 192
  %v755 = vld [vmem:[%s754] sm:$0xf]
  %v756 = vld [vmem:[%s754 + $0x4] sm:$0xf]
  %v757 = vld [vmem:[%s754 + $0x8] sm:$0xf]
  %v758 = vld [vmem:[%s754 + $0xc] sm:$0xf]
  %v759 = vld [vmem:[%s754 + $0x10] sm:$0xf]
  %v760 = vld [vmem:[%s754 + $0x14] sm:$0xf]
  %v761 = vld [vmem:[%s754 + $0x18] sm:$0xf]
  %v762 = vld [vmem:[%s754 + $0x1c] sm:$0xf]
  %v763 = vld [vmem:[%s754 + $0x20] sm:$0xf]
  %v764 = vld [vmem:[%s754 + $0x24] sm:$0xf]
  %v765 = vld [vmem:[%s754 + $0x28] sm:$0xf]
  %v766 = vld [vmem:[%s754 + $0x2c] sm:$0xf]
  %v767 = vld [vmem:[%s754 + $0x30] sm:$0xf]
  %v768 = vld [vmem:[%s754 + $0x34] sm:$0xf]
  %v769 = vld [vmem:[%s754 + $0x38] sm:$0xf]
  %v770 = vld [vmem:[%s754 + $0x3c] sm:$0xf]
  %v771 = vpack.c.bf16 %v752, %v750
  %v788 = vunpack.c.l.b16 %v755
  %v789 = vunpack.c.l.b16 %v756
  %v790 = vunpack.c.l.b16 %v757
  %v791 = vunpack.c.l.b16 %v758
  %v792 = vunpack.c.l.b16 %v759
  %v793 = vunpack.c.l.b16 %v760
  %v794 = vunpack.c.l.b16 %v761
  %v795 = vunpack.c.l.b16 %v762
  %v796 = vunpack.c.l.b16 %v763
  %v797 = vunpack.c.l.b16 %v764
  %v798 = vunpack.c.l.b16 %v765
  %v799 = vunpack.c.l.b16 %v766
  %v800 = vunpack.c.l.b16 %v767
  %v801 = vunpack.c.l.b16 %v768
  %v802 = vunpack.c.l.b16 %v769
  %v803 = vunpack.c.l.b16 %v770
  %v804 = vpack.c.b16 %v789, %v788
  %v805 = vpack.c.b16 %v791, %v790
  %v806 = vpack.c.b16 %v793, %v792
  %v807 = vpack.c.b16 %v795, %v794
  %v808 = vpack.c.b16 %v797, %v796
  %v809 = vpack.c.b16 %v799, %v798
  %v810 = vpack.c.b16 %v801, %v800
  %v811 = vpack.c.b16 %v803, %v802
  %820 = vmatpush.bf16.msra.mxu0 %v811
  %821 = vmatpush.bf16.msra.mxu0 %v810
  %822 = vmatpush.bf16.msra.mxu0 %v809
  %823 = vmatpush.bf16.msra.mxu0 %v808
  %824 = vmatpush.bf16.msra.mxu0 %v807
  %825 = vmatpush.bf16.msra.mxu0 %v806
  %826 = vmatpush.bf16.msra.mxu0 %v805
  %827 = vmatpush.bf16.msra.mxu0 %v804
  %828 = vmatmul.bf16.gmra.mxu0 %v771
  %v829 = vpop.f32.mrf.mxu0
  %v830 = vadd.f32 0.0, %v829
  %v831 = vpop.f32.mrf.mxu0
  %v832 = vadd.f32 0.0, %v831
  %833 = vdwg.mxu0
  %v834 = vpack.c.bf16 %v832, %v830
  %s835 = scalar_lea.vmem %s3, 3
  %v836 = vld [vmem:[%s835] sm:$0x1]
  %v838 = vperm.slane %v836, 0
  %840 = vmatpush.bf16.msra.mxu0 0
  %841 = vmatpush.bf16.msra.mxu0 0
  %842 = vmatpush.bf16.msra.mxu0 0
  %843 = vmatpush.bf16.msra.mxu0 0
  %844 = vmatpush.bf16.msra.mxu0 0
  %845 = vmatpush.bf16.msra.mxu0 0
  %846 = vmatpush.bf16.msra.mxu0 0
  %847 = vmatpush.bf16.msra.mxu0 %v834
  %848 = vmatmul.bf16.gmra.mxu0 %v718
  %v849 = vpop.f32.mrf.mxu0
  %v850 = vadd.f32 %v838, %v849
  %v851 = vpop.f32.mrf.mxu0
  %v852 = vadd.f32 %v838, %v851
  %853 = vdwg.mxu0
  %v854 = vmax.f32 %v850, 0.0
  %v855 = vmax.f32 %v852, 0.0
  %v856 = vpack.c.bf16 %v855, %v854
  %v858 = vsel %vm36, %v282, 0
  %860 = vmatpush.bf16.msra.mxu0 0
  %861 = vmatpush.bf16.msra.mxu0 0
  %862 = vmatpush.bf16.msra.mxu0 0
  %863 = vmatpush.bf16.msra.mxu0 0
  %864 = vmatpush.bf16.msra.mxu0 0
  %865 = vmatpush.bf16.msra.mxu0 0
  %866 = vmatpush.bf16.msra.mxu0 0
  %867 = vmatpush.bf16.msra.mxu0 %v856
  %868 = vmatmul.bf16.gmra.mxu0 %v858
  %v869 = vpop.f32.mrf.mxu0
  %v870 = vadd.f32 0.0, %v869
  %v871 = vpop.f32.mrf.mxu0
  %v872 = vadd.f32 0.0, %v871
  %873 = vdwg.mxu0
  %s874 = scalar_lea.vmem %s2, 256
  %v875 = vld [vmem:[%s874] sm:$0xf]
  %v876 = vld [vmem:[%s874 + $0x4] sm:$0xf]
  %v877 = vld [vmem:[%s874 + $0x8] sm:$0xf]
  %v878 = vld [vmem:[%s874 + $0xc] sm:$0xf]
  %v879 = vld [vmem:[%s874 + $0x10] sm:$0xf]
  %v880 = vld [vmem:[%s874 + $0x14] sm:$0xf]
  %v881 = vld [vmem:[%s874 + $0x18] sm:$0xf]
  %v882 = vld [vmem:[%s874 + $0x1c] sm:$0xf]
  %v883 = vld [vmem:[%s874 + $0x20] sm:$0xf]
  %v884 = vld [vmem:[%s874 + $0x24] sm:$0xf]
  %v885 = vld [vmem:[%s874 + $0x28] sm:$0xf]
  %v886 = vld [vmem:[%s874 + $0x2c] sm:$0xf]
  %v887 = vld [vmem:[%s874 + $0x30] sm:$0xf]
  %v888 = vld [vmem:[%s874 + $0x34] sm:$0xf]
  %v889 = vld [vmem:[%s874 + $0x38] sm:$0xf]
  %v890 = vld [vmem:[%s874 + $0x3c] sm:$0xf]
  %v891 = vpack.c.bf16 %v872, %v870
  %v908 = vunpack.c.l.b16 %v875
  %v909 = vunpack.c.l.b16 %v876
  %v910 = vunpack.c.l.b16 %v877
  %v911 = vunpack.c.l.b16 %v878
  %v912 = vunpack.c.l.b16 %v879
  %v913 = vunpack.c.l.b16 %v880
  %v914 = vunpack.c.l.b16 %v881
  %v915 = vunpack.c.l.b16 %v882
  %v916 = vunpack.c.l.b16 %v883
  %v917 = vunpack.c.l.b16 %v884
  %v918 = vunpack.c.l.b16 %v885
  %v919 = vunpack.c.l.b16 %v886
  %v920 = vunpack.c.l.b16 %v887
  %v921 = vunpack.c.l.b16 %v888
  %v922 = vunpack.c.l.b16 %v889
  %v923 = vunpack.c.l.b16 %v890
  %v924 = vpack.c.b16 %v909, %v908
  %v925 = vpack.c.b16 %v911, %v910
  %v926 = vpack.c.b16 %v913, %v912
  %v927 = vpack.c.b16 %v915, %v914
  %v928 = vpack.c.b16 %v917, %v916
  %v929 = vpack.c.b16 %v919, %v918
  %v930 = vpack.c.b16 %v921, %v920
  %v931 = vpack.c.b16 %v923, %v922
  %940 = vmatpush.bf16.msra.mxu0 %v931
  %941 = vmatpush.bf16.msra.mxu0 %v930
  %942 = vmatpush.bf16.msra.mxu0 %v929
  %943 = vmatpush.bf16.msra.mxu0 %v928
  %944 = vmatpush.bf16.msra.mxu0 %v927
  %945 = vmatpush.bf16.msra.mxu0 %v926
  %946 = vmatpush.bf16.msra.mxu0 %v925
  %947 = vmatpush.bf16.msra.mxu0 %v924
  %948 = vmatmul.bf16.gmra.mxu0 %v891
  %v949 = vpop.f32.mrf.mxu0
  %v950 = vadd.f32 0.0, %v949
  %v951 = vpop.f32.mrf.mxu0
  %v952 = vadd.f32 0.0, %v951
  %953 = vdwg.mxu0
  %v954 = vpack.c.bf16 %v952, %v950
  %s955 = scalar_lea.vmem %s3, 4
  %v956 = vld [vmem:[%s955] sm:$0x1]
  %v958 = vperm.slane %v956, 0
  %960 = vmatpush.bf16.msra.mxu0 0
  %961 = vmatpush.bf16.msra.mxu0 0
  %962 = vmatpush.bf16.msra.mxu0 0
  %963 = vmatpush.bf16.msra.mxu0 0
  %964 = vmatpush.bf16.msra.mxu0 0
  %965 = vmatpush.bf16.msra.mxu0 0
  %966 = vmatpush.bf16.msra.mxu0 0
  %967 = vmatpush.bf16.msra.mxu0 %v954
  %968 = vmatmul.bf16.gmra.mxu0 %v718
  %v969 = vpop.f32.mrf.mxu0
  %v970 = vadd.f32 %v958, %v969
  %v971 = vpop.f32.mrf.mxu0
  %v972 = vadd.f32 %v958, %v971
  %973 = vdwg.mxu0
  %v974 = vmax.f32 %v970, 0.0
  %v975 = vmax.f32 %v972, 0.0
  %s976 = scalar_lea.vmem %s2, 320
  %v977 = vld [vmem:[%s976] sm:$0xf]
  %v978 = vld [vmem:[%s976 + $0x4] sm:$0xf]
  %v979 = vld [vmem:[%s976 + $0x8] sm:$0xf]
  %v980 = vld [vmem:[%s976 + $0xc] sm:$0xf]
  %v981 = vld [vmem:[%s976 + $0x10] sm:$0xf]
  %v982 = vld [vmem:[%s976 + $0x14] sm:$0xf]
  %v983 = vld [vmem:[%s976 + $0x18] sm:$0xf]
  %v984 = vld [vmem:[%s976 + $0x1c] sm:$0xf]
  %v985 = vld [vmem:[%s976 + $0x20] sm:$0xf]
  %v986 = vld [vmem:[%s976 + $0x24] sm:$0xf]
  %v987 = vld [vmem:[%s976 + $0x28] sm:$0xf]
  %v988 = vld [vmem:[%s976 + $0x2c] sm:$0xf]
  %v989 = vld [vmem:[%s976 + $0x30] sm:$0xf]
  %v990 = vld [vmem:[%s976 + $0x34] sm:$0xf]
  %v991 = vld [vmem:[%s976 + $0x38] sm:$0xf]
  %v992 = vld [vmem:[%s976 + $0x3c] sm:$0xf]
  %v993 = vpack.c.bf16 %v975, %v974
  %v1010 = vunpack.c.l.b16 %v977
  %v1011 = vunpack.c.l.b16 %v978
  %v1012 = vunpack.c.l.b16 %v979
  %v1013 = vunpack.c.l.b16 %v980
  %v1014 = vunpack.c.l.b16 %v981
  %v1015 = vunpack.c.l.b16 %v982
  %v1016 = vunpack.c.l.b16 %v983
  %v1017 = vunpack.c.l.b16 %v984
  %v1018 = vunpack.c.l.b16 %v985
  %v1019 = vunpack.c.l.b16 %v986
  %v1020 = vunpack.c.l.b16 %v987
  %v1021 = vunpack.c.l.b16 %v988
  %v1022 = vunpack.c.l.b16 %v989
  %v1023 = vunpack.c.l.b16 %v990
  %v1024 = vunpack.c.l.b16 %v991
  %v1025 = vunpack.c.l.b16 %v992
  %v1026 = vpack.c.b16 %v1011, %v1010
  %v1027 = vpack.c.b16 %v1013, %v1012
  %v1028 = vpack.c.b16 %v1015, %v1014
  %v1029 = vpack.c.b16 %v1017, %v1016
  %v1030 = vpack.c.b16 %v1019, %v1018
  %v1031 = vpack.c.b16 %v1021, %v1020
  %v1032 = vpack.c.b16 %v1023, %v1022
  %v1033 = vpack.c.b16 %v1025, %v1024
  %1042 = vmatpush.bf16.msra.mxu0 %v1033
  %1043 = vmatpush.bf16.msra.mxu0 %v1032
  %1044 = vmatpush.bf16.msra.mxu0 %v1031
  %1045 = vmatpush.bf16.msra.mxu0 %v1030
  %1046 = vmatpush.bf16.msra.mxu0 %v1029
  %1047 = vmatpush.bf16.msra.mxu0 %v1028
  %1048 = vmatpush.bf16.msra.mxu0 %v1027
  %1049 = vmatpush.bf16.msra.mxu0 %v1026
  %1050 = vmatmul.bf16.gmra.mxu0 %v993
  %v1051 = vpop.f32.mrf.mxu0
  %v1052 = vadd.f32 0.0, %v1051
  %v1053 = vpop.f32.mrf.mxu0
  %v1054 = vadd.f32 0.0, %v1053
  %1055 = vdwg.mxu0
  %v1056 = vpack.c.bf16 %v1054, %v1052
  %s1057 = scalar_lea.vmem %s3, 5
  %v1058 = vld [vmem:[%s1057] sm:$0x1]
  %v1060 = vperm.slane %v1058, 0
  %1062 = vmatpush.bf16.msra.mxu0 0
  %1063 = vmatpush.bf16.msra.mxu0 0
  %1064 = vmatpush.bf16.msra.mxu0 0
  %1065 = vmatpush.bf16.msra.mxu0 0
  %1066 = vmatpush.bf16.msra.mxu0 0
  %1067 = vmatpush.bf16.msra.mxu0 0
  %1068 = vmatpush.bf16.msra.mxu0 0
  %1069 = vmatpush.bf16.msra.mxu0 %v1056
  %1070 = vmatmul.bf16.gmra.mxu0 %v718
  %v1071 = vpop.f32.mrf.mxu0
  %v1072 = vadd.f32 %v1060, %v1071
  %v1073 = vpop.f32.mrf.mxu0
  %v1074 = vadd.f32 %v1060, %v1073
  %1075 = vdwg.mxu0
  %1076 = vst [vmem:[%s5] sm:$0xff] %v1072
  %1077 = vst [vmem:[%s5 + $0x8] sm:$0xff] %v1074
  // Predicated region
  $region22: #{graph_unet_forward.1} parent=0 // pred_check
    _
  $region23: #{graph_unet_forward.1} parent=0 // pred_check_branch
    %1079 = sbr.rel (0) target = $region25
  $region24: #{graph_unet_forward.1} parent=0 // pred_region
    _
  $region25: #{graph_unet_forward.1} parent=0 // pred_fallthru
    _
  // Predicated region
  $region26: #{graph_unet_forward.1} parent=0 // pred_check
    _
  $region27: #{graph_unet_forward.1} parent=0 // pred_check_branch
    %1081 = sbr.rel (0) target = $region29
  $region28: #{graph_unet_forward.1} parent=0 // pred_region
    _
  $region29: #{graph_unet_forward.1} parent=0 // pred_fallthru
    _

</llo_original>
